<compile_context>
chip_gen: v6e
topology: v6e:2x2x1
jax: 0.10.0
libtpu: 0.0.40
codegen_flags: <defaults>
</compile_context>

<pallas_src>
import jax
import jax.numpy as jnp
import numpy as np
from jax import lax
from jax.experimental import pallas as pl
from jax.experimental.pallas import tpu as pltpu


def fourier_embedding(vals, emb_dim):
    """FourierEmbedding.forward: cat([sin(t*freqs), cos(t*freqs)], dim=1)."""
    freqs = jnp.linspace(1.0, 10.0, emb_dim // 2, dtype=jnp.float32)
    t = vals.astype(jnp.float32)[:, None] * freqs[None, :]
    return jnp.concatenate([jnp.sin(t), jnp.cos(t)], axis=1)          # [B, emb]


def upsample_matrix(n):
    """nn.Upsample(scale_factor=2, mode='bilinear', align_corners=False) along
    one axis, as a dense (2n, n) interpolation matrix (src = max((d+.5)*.5-.5, 0))."""
    out = 2 * n
    U = np.zeros((out, n), np.float32)
    for i in range(out):
        src = max((i + 0.5) * 0.5 - 0.5, 0.0)
        x0 = int(np.floor(src))
        x1 = min(x0 + 1, n - 1)
        lam = src - x0
        U[i, x0] += 1.0 - lam
        U[i, x1] += lam
    return jnp.asarray(U)


def make_kernel(H, W, C, Cout):
    C4 = 4 * C
    WC, WC4, WCo = W * C, W * C4, W * Cout
    Ho, Wo = 2 * H, 2 * W
    WoCo = Wo * Cout

    def kernel(x_ref, scale_ref, dwt_ref, w1k_ref, b1t_ref, w2k_ref, b2t_ref,
               uh_ref, wbig_ref, cbt_ref, bn2s_ref, bn2t_ref, out_ref,
               pad1, t1pad):
        # ---- depthwise 3x3 conv (padding=1) on the lane-flattened [H, W*C] slab.
        # Only the (tiny) zero borders of the scratch are rewritten each step,
        # so this is cheap and correct even if the batch grid axis is split
        # across TensorCores (megacore).
        pad1[0:1, :] = jnp.zeros((1, (W + 2) * C), jnp.float32)
        pad1[H + 1:H + 2, :] = jnp.zeros((1, (W + 2) * C), jnp.float32)
        pad1[:, 0:C] = jnp.zeros((H + 2, C), jnp.float32)
        pad1[:, (W + 1) * C:(W + 2) * C] = jnp.zeros((H + 2, C), jnp.float32)
        pad1[1:H + 1, C:(W + 1) * C] = x_ref[0]

        dw = jnp.zeros((H, WC), jnp.float32)
        for di in range(3):
            for dj in range(3):
                t = 3 * di + dj
                dw = dw + pad1[di:di + H, dj * C:dj * C + WC] * dwt_ref[t:t + 1, :]

        # fused per-channel scale: sigmoid(t_att) * sigmoid(a_att) * bn1_scale
        dw = dw * scale_ref[0]

        # ---- pwconv1 (+ folded dwconv bias & BN1 shift): [H,W*C] @ kron(I_W, w1)
        h1 = jnp.dot(dw.astype(jnp.bfloat16), w1k_ref[...],
                     preferred_element_type=jnp.float32) + b1t_ref[...]
        s1 = h1 * jax.nn.sigmoid(h1)                                   # SiLU

        # ---- pwconv2 (+ bias): [H, W*4C] @ kron(I_W, w2)
        h2 = jnp.dot(s1.astype(jnp.bfloat16), w2k_ref[...],
                     preferred_element_type=jnp.float32) + b2t_ref[...]

        # ---- 2x bilinear upsample along H (align_corners=False): Uh @ h2
        t1 = jnp.dot(uh_ref[...], h2, preferred_element_type=jnp.float32)   # [Ho, W*Cout]

        # ---- fused (2x bilinear upsample along W) ∘ (3x3 conv, pad=1):
        #   out_row[p] = sum_di t1pad[p+di] @ Wbig[di]   (t1 zero-padded in H)
        t1pad[0:1, :] = jnp.zeros((1, WCo), jnp.float32)
        t1pad[Ho + 1:Ho + 2, :] = jnp.zeros((1, WCo), jnp.float32)
        t1pad[1:Ho + 1, :] = t1

        acc = jnp.zeros((Ho, WoCo), jnp.float32)
        for di in range(3):
            acc = acc + jnp.dot(t1pad[di:di + Ho, :].astype(jnp.bfloat16),
                                wbig_ref[di],
                                preferred_element_type=jnp.float32)
        acc = acc + cbt_ref[...]

        # ---- SiLU + BatchNorm2d(Cout) (inference); lane-dense [Ho, Wo*Cout] store.
        acc = acc * jax.nn.sigmoid(acc)
        out_ref[0] = acc * bn2s_ref[...] + bn2t_ref[...]

    return kernel


def convnext_block_fourier(x_nchw, timesteps, angles, params, emb_dim):
    x = jnp.transpose(x_nchw, (0, 2, 3, 1)).astype(jnp.float32)   # NCHW -> NHWC
    B, H, W, C = x.shape
    Cout = params['w2'].shape[1]
    C4 = 4 * C
    Ho, Wo = 2 * H, 2 * W
    WC, WC4, WCo, WoCo = W * C, W * C4, W * Cout, Wo * Cout

    # --- Fourier-embedding attention (hoisted out of the kernel, tiny work).
    # bf16 round-trip of the embeddings mirrors the PyTorch `.to(torch.bfloat16)`.
    temb = fourier_embedding(timesteps, emb_dim).astype(jnp.bfloat16).astype(jnp.float32)
    aemb = fourier_embedding(angles, emb_dim).astype(jnp.bfloat16).astype(jnp.float32)
    att = (jax.nn.sigmoid(temb @ params['wt'] + params['bt'])
           * jax.nn.sigmoid(aemb @ params['wa'] + params['ba']))          # [B, C]

    # Fused per-channel scale (attention * BN1 scale), tiled to the [H, W*C] layout.
    scale = att * params['bn1s']                                          # [B, C]
    scale_t = jnp.tile(scale, (1, W)).reshape(B, 1, WC)

    # Depthwise weights tiled along W for the lane-flattened layout.
    dwt = jnp.tile(params['dww'].reshape(9, C), (1, W))                   # [9, W*C]

    # Folded shift: (dwconv bias * bn1 scale + bn1 shift) pushed through pwconv1.
    shift = params['dwb'][0] * params['bn1s'][0] + params['bn1t'][0]      # [C]
    b1_eff = params['b1'][0] + shift @ params['w1']                       # [4C]
    b1t = jnp.tile(b1_eff, W).reshape(1, WC4)
    b2t = jnp.tile(params['b2'][0], W).reshape(1, WCo)

    # Block-diagonal pointwise weights, bf16 for the MXU.
    eyeW = jnp.eye(W, dtype=jnp.float32)
    w1k = jnp.kron(eyeW, params['w1']).astype(jnp.bfloat16)               # [W*C,  W*4C]
    w2k = jnp.kron(eyeW, params['w2']).astype(jnp.bfloat16)               # [W*4C, W*Cout]

    # Separable bilinear upsample; the W-direction upsample is fused with the
    # 3x3 output conv into three [W*Cout, Wo*Cout] weight slabs (one per H-tap).
    Uh = upsample_matrix(H)                                               # [Ho, H]
    Uw = upsample_matrix(W)                                               # [Wo, W]
    Uw_ext = jnp.zeros((Wo + 2, W), jnp.float32).at[1:Wo + 1].set(Uw)     # zero-pad (conv W-pad)
    Uw_shift = jnp.stack([Uw_ext[dj:dj + Wo] for dj in range(3)], axis=0)  # [3, Wo, W]
    wbig = jnp.einsum('ijde,jqw->iwdqe', params['cw'], Uw_shift)
    wbig = wbig.reshape(3, WCo, WoCo).astype(jnp.bfloat16)                # [3, W*Cout, Wo*Cout]

    cbt = jnp.tile(params['cb'][0], Wo).reshape(1, WoCo)
    bn2s_t = jnp.tile(params['bn2s'][0], Wo).reshape(1, WoCo)
    bn2t_t = jnp.tile(params['bn2t'][0], Wo).reshape(1, WoCo)

    x2 = x.reshape(B, H, WC)                                              # lane-dense input

    weights = [dwt, w1k, b1t, w2k, b2t, Uh, wbig, cbt, bn2s_t, bn2t_t]

    def full_spec(a):
        nd = a.ndim
        return pl.BlockSpec(a.shape, lambda b, _nd=nd: (0,) * _nd)

    in_specs = ([pl.BlockSpec((1, H, WC), lambda b: (b, 0, 0)),
                 pl.BlockSpec((1, 1, WC), lambda b: (b, 0, 0))]
                + [full_spec(w) for w in weights])
    out_spec = pl.BlockSpec((1, Ho, WoCo), lambda b: (b, 0, 0))           # lane-dense output slab

    kernel = make_kernel(H, W, C, Cout)

    out = pl.pallas_call(
        kernel,
        out_shape=jax.ShapeDtypeStruct((B, Ho, WoCo), jnp.float32),
        grid_spec=pltpu.PrefetchScalarGridSpec(
            num_scalar_prefetch=0,
            grid=(B,),
            in_specs=in_specs,
            out_specs=out_spec,
            scratch_shapes=[pltpu.VMEM((H + 2, (W + 2) * C), jnp.float32),
                            pltpu.VMEM((Ho + 2, WCo), jnp.float32)]),
        compiler_params=pltpu.CompilerParams(
            dimension_semantics=("parallel",),
            vmem_limit_bytes=32 * 1024 * 1024),
    )(x2, scale_t, *weights)

    out = out.reshape(B, Ho, Wo, Cout)
    return jnp.transpose(out, (0, 3, 1, 2))                              # NHWC -> NCHW


def init_params(key, c_in, c_out, emb_dim):
    ks = jax.random.split(key, 20)
    def nrm(k, shape, scale=0.1):
        return jax.random.normal(k, shape, jnp.float32) * scale
    eps = 1e-5
    p = {}
    # FourierEmbeddingAttention fc layers (stored transposed: [emb, C]).
    p['wt'], p['bt'] = nrm(ks[0], (emb_dim, c_in), 0.2), nrm(ks[1], (1, c_in))
    p['wa'], p['ba'] = nrm(ks[2], (emb_dim, c_in), 0.2), nrm(ks[3], (1, c_in))
    # dwconv: PyTorch weight [C,1,3,3] stored as [3,3,C]; bias [1,C].
    p['dww'], p['dwb'] = nrm(ks[4], (3, 3, c_in), 0.3), nrm(ks[5], (1, c_in))
    # BatchNorm2d(C): inference-mode running stats folded to scale/shift.
    g1, b1 = 1.0 + nrm(ks[6], (c_in,)), nrm(ks[7], (c_in,))
    m1, v1 = nrm(ks[8], (c_in,)), 1.0 + jnp.abs(nrm(ks[9], (c_in,)))
    s1 = g1 / jnp.sqrt(v1 + eps)
    p['bn1s'], p['bn1t'] = s1[None, :], (b1 - m1 * s1)[None, :]
    # pwconv1 / pwconv2 (stored transposed for right-multiplication).
    p['w1'], p['b1'] = nrm(ks[10], (c_in, 4 * c_in), 0.3), nrm(ks[11], (1, 4 * c_in))
    p['w2'], p['b2'] = nrm(ks[12], (4 * c_in, c_out), 0.3), nrm(ks[13], (1, c_out))
    # transconv conv: PyTorch weight [Cout,Cout,3,3] stored HWIO [3,3,Cin,Cout].
    p['cw'], p['cb'] = nrm(ks[14], (3, 3, c_out, c_out), 0.3), nrm(ks[15], (1, c_out))
    g2, b2 = 1.0 + nrm(ks[16], (c_out,)), nrm(ks[17], (c_out,))
    m2, v2 = nrm(ks[18], (c_out,)), 1.0 + jnp.abs(nrm(ks[19], (c_out,)))
    s2 = g2 / jnp.sqrt(v2 + eps)
    p['bn2s'], p['bn2t'] = s2[None, :], (b2 - m2 * s2)[None, :]
    return p


def reference_forward(x_nchw, timesteps, angles, p, emb_dim):
    """Pure-JAX f32 reference mirroring the PyTorch forward (NHWC internally)."""
    x = jnp.transpose(x_nchw, (0, 2, 3, 1)).astype(jnp.float32)
    B, H, W, C = x.shape
    te = fourier_embedding(timesteps, emb_dim).astype(jnp.bfloat16).astype(jnp.float32)
    ae = fourier_embedding(angles, emb_dim).astype(jnp.bfloat16).astype(jnp.float32)
    att_t = jax.nn.sigmoid(te @ p['wt'] + p['bt'])                # [B, C]
    att_a = jax.nn.sigmoid(ae @ p['wa'] + p['ba'])
    x = x * att_t[:, None, None, :] * att_a[:, None, None, :]
    dwk = p['dww'][:, :, None, :]                                 # [3,3,1,C] HWIO
    y = lax.conv_general_dilated(
        x, dwk, (1, 1), 'SAME',
        dimension_numbers=('NHWC', 'HWIO', 'NHWC'), feature_group_count=C)
    y = y + p['dwb'][0]
    y = y * p['bn1s'][0] + p['bn1t'][0]
    y = jax.nn.silu(y @ p['w1'] + p['b1'][0])
    y = y @ p['w2'] + p['b2'][0]                                  # [B,H,W,Cout]
    Uh, Uw = upsample_matrix(H), upsample_matrix(W)
    y = jnp.einsum('ph,bhwc->bpwc', Uh, y)
    y = jnp.einsum('qw,bpwc->bpqc', Uw, y)
    z = lax.conv_general_dilated(
        y, p['cw'], (1, 1), 'SAME',
        dimension_numbers=('NHWC', 'HWIO', 'NHWC')) + p['cb'][0]
    z = jax.nn.silu(z)
    z = z * p['bn2s'][0] + p['bn2t'][0]
    return jnp.transpose(z, (0, 3, 1, 2))


if __name__ == "__main__":
    B, C_IN, C_OUT, H, W, EMB = 2, 4, 8, 16, 16, 32
    key = jax.random.PRNGKey(0)
    kx, kt, ka, kp = jax.random.split(key, 4)

    x = jax.random.normal(kx, (B, C_IN, H, W), jnp.float32)       # NCHW like PyTorch
    timesteps = jax.random.uniform(kt, (B,), jnp.float32, 0.0, 1.0)
    angles = jax.random.uniform(ka, (B,), jnp.float32, 0.0, 3.1415)
    params = init_params(kp, C_IN, C_OUT, EMB)

    out = convnext_block_fourier(x, timesteps, angles, params, EMB)
    out = jax.block_until_ready(out)
    assert out.shape == (B, C_OUT, 2 * H, 2 * W), out.shape

    ref = reference_forward(x, timesteps, angles, params, EMB)
    # atol slightly above the earlier 2e-2 because the kernel now feeds the MXU
    # bf16 operands (per TPU perf guidance) while the reference is pure f32.
    np.testing.assert_allclose(np.asarray(out), np.asarray(ref), rtol=2e-2, atol=3e-2)

    print("KERNEL_OK")
</pallas_src>

<mosaic_0001>
module attributes {stable_mosaic.version = 11 : i64} {
  func.func @kernel(%arg0: i32, %arg1: memref<1x16x64xf32, #tpu.memory_space<vmem>>, %arg2: memref<1x1x64xf32, #tpu.memory_space<vmem>>, %arg3: memref<9x64xf32, #tpu.memory_space<vmem>>, %arg4: memref<64x256xbf16, #tpu.memory_space<vmem>>, %arg5: memref<1x256xf32, #tpu.memory_space<vmem>>, %arg6: memref<256x128xbf16, #tpu.memory_space<vmem>>, %arg7: memref<1x128xf32, #tpu.memory_space<vmem>>, %arg8: memref<32x16xf32, #tpu.memory_space<vmem>>, %arg9: memref<3x128x256xbf16, #tpu.memory_space<vmem>>, %arg10: memref<1x256xf32, #tpu.memory_space<vmem>>, %arg11: memref<1x256xf32, #tpu.memory_space<vmem>>, %arg12: memref<1x256xf32, #tpu.memory_space<vmem>>, %arg13: memref<1x32x256xf32, #tpu.memory_space<vmem>>, %arg14: memref<18x72xf32, #tpu.memory_space<vmem>>, %arg15: memref<34x128xf32, #tpu.memory_space<vmem>>) attributes {dimension_semantics = [#tpu.dimension_semantics<parallel>], iteration_bounds = array<i64: 2>, scalar_prefetch = 0 : i64, scratch_operands = 2 : i64, tpu.core_type = #tpu.core_type<tc>, window_params = [{transform_indices = @transform_0, window_bounds = array<i64: 1, 16, 64>}, {transform_indices = @transform_1, window_bounds = array<i64: 1, 1, 64>}, {pipeline_mode = #tpu.pipeline_mode<synchronous>, transform_indices = @transform_2, window_bounds = array<i64: 9, 64>}, {pipeline_mode = #tpu.pipeline_mode<synchronous>, transform_indices = @transform_3, window_bounds = array<i64: 64, 256>}, {pipeline_mode = #tpu.pipeline_mode<synchronous>, transform_indices = @transform_4, window_bounds = array<i64: 1, 256>}, {pipeline_mode = #tpu.pipeline_mode<synchronous>, transform_indices = @transform_5, window_bounds = array<i64: 256, 128>}, {pipeline_mode = #tpu.pipeline_mode<synchronous>, transform_indices = @transform_6, window_bounds = array<i64: 1, 128>}, {pipeline_mode = #tpu.pipeline_mode<synchronous>, transform_indices = @transform_7, window_bounds = array<i64: 32, 16>}, {pipeline_mode = #tpu.pipeline_mode<synchronous>, transform_indices = @transform_8, window_bounds = array<i64: 3, 128, 256>}, {pipeline_mode = #tpu.pipeline_mode<synchronous>, transform_indices = @transform_9, window_bounds = array<i64: 1, 256>}, {pipeline_mode = #tpu.pipeline_mode<synchronous>, transform_indices = @transform_10, window_bounds = array<i64: 1, 256>}, {pipeline_mode = #tpu.pipeline_mode<synchronous>, transform_indices = @transform_11, window_bounds = array<i64: 1, 256>}, {transform_indices = @transform_12, window_bounds = array<i64: 1, 32, 256>}]} {
    %cst = arith.constant 0.000000e+00 : f32
    %0 = vector.broadcast %cst : f32 to vector<1x72xf32>
    %c0 = arith.constant 0 : index
    %c0_0 = arith.constant 0 : index
    %1 = vector.load %arg14[%c0, %c0_0] : memref<18x72xf32, #tpu.memory_space<vmem>>, vector<1x72xf32>
    tpu.vector_store %arg14[%c0, %c0_0], %0 {strides = array<i32>} : memref<18x72xf32, #tpu.memory_space<vmem>>, vector<1x72xf32>,
    %cst_1 = arith.constant 0.000000e+00 : f32
    %2 = vector.broadcast %cst_1 : f32 to vector<1x72xf32>
    %c17 = arith.constant 17 : index
    %c0_2 = arith.constant 0 : index
    %3 = vector.load %arg14[%c17, %c0_2] : memref<18x72xf32, #tpu.memory_space<vmem>>, vector<1x72xf32>
    tpu.vector_store %arg14[%c17, %c0_2], %2 {strides = array<i32>} : memref<18x72xf32, #tpu.memory_space<vmem>>, vector<1x72xf32>,
    %cst_3 = arith.constant 0.000000e+00 : f32
    %4 = vector.broadcast %cst_3 : f32 to vector<18x4xf32>
    %c0_4 = arith.constant 0 : index
    %c0_5 = arith.constant 0 : index
    %5 = vector.load %arg14[%c0_4, %c0_5] : memref<18x72xf32, #tpu.memory_space<vmem>>, vector<18x4xf32>
    tpu.vector_store %arg14[%c0_4, %c0_5], %4 {strides = array<i32>} : memref<18x72xf32, #tpu.memory_space<vmem>>, vector<18x4xf32>,
    %cst_6 = arith.constant 0.000000e+00 : f32
    %6 = vector.broadcast %cst_6 : f32 to vector<18x4xf32>
    %c0_7 = arith.constant 0 : index
    %c68 = arith.constant 68 : index
    %7 = vector.load %arg14[%c0_7, %c68] : memref<18x72xf32, #tpu.memory_space<vmem>>, vector<18x4xf32>
    tpu.vector_store %arg14[%c0_7, %c68], %6 {strides = array<i32>} : memref<18x72xf32, #tpu.memory_space<vmem>>, vector<18x4xf32>,
    %c0_8 = arith.constant 0 : index
    %c0_9 = arith.constant 0 : index
    %c0_10 = arith.constant 0 : index
    %8 = vector.load %arg1[%c0_8, %c0_9, %c0_10] : memref<1x16x64xf32, #tpu.memory_space<vmem>>, vector<1x16x64xf32>
    %9 = vector.shape_cast %8 : vector<1x16x64xf32> to vector<16x64xf32>
    %c1 = arith.constant 1 : index
    %c4 = arith.constant 4 : index
    %10 = vector.load %arg14[%c1, %c4] : memref<18x72xf32, #tpu.memory_space<vmem>>, vector<16x64xf32>
    tpu.vector_store %arg14[%c1, %c4], %9 {strides = array<i32>} : memref<18x72xf32, #tpu.memory_space<vmem>>, vector<16x64xf32>,
    %cst_11 = arith.constant 0.000000e+00 : f32
    %11 = vector.broadcast %cst_11 : f32 to vector<16x64xf32>
    %c0_12 = arith.constant 0 : index
    %c0_13 = arith.constant 0 : index
    %12 = vector.load %arg14[%c0_12, %c0_13] : memref<18x72xf32, #tpu.memory_space<vmem>>, vector<16x64xf32>
    %c0_14 = arith.constant 0 : index
    %c0_15 = arith.constant 0 : index
    %13 = vector.load %arg3[%c0_14, %c0_15] : memref<9x64xf32, #tpu.memory_space<vmem>>, vector<1x64xf32>
    %14 = vector.broadcast %13 : vector<1x64xf32> to vector<16x64xf32>
    %15 = arith.mulf %12, %14 : vector<16x64xf32>
    %16 = arith.addf %11, %15 : vector<16x64xf32>
    %c0_16 = arith.constant 0 : index
    %c4_17 = arith.constant 4 : index
    %17 = vector.load %arg14[%c0_16, %c4_17] : memref<18x72xf32, #tpu.memory_space<vmem>>, vector<16x64xf32>
    %c1_18 = arith.constant 1 : index
    %c0_19 = arith.constant 0 : index
    %18 = vector.load %arg3[%c1_18, %c0_19] : memref<9x64xf32, #tpu.memory_space<vmem>>, vector<1x64xf32>
    %19 = vector.broadcast %18 : vector<1x64xf32> to vector<16x64xf32>
    %20 = arith.mulf %17, %19 : vector<16x64xf32>
    %21 = arith.addf %16, %20 : vector<16x64xf32>
    %c0_20 = arith.constant 0 : index
    %c8 = arith.constant 8 : index
    %22 = vector.load %arg14[%c0_20, %c8] : memref<18x72xf32, #tpu.memory_space<vmem>>, vector<16x64xf32>
    %c2 = arith.constant 2 : index
    %c0_21 = arith.constant 0 : index
    %23 = vector.load %arg3[%c2, %c0_21] : memref<9x64xf32, #tpu.memory_space<vmem>>, vector<1x64xf32>
    %24 = vector.broadcast %23 : vector<1x64xf32> to vector<16x64xf32>
    %25 = arith.mulf %22, %24 : vector<16x64xf32>
    %26 = arith.addf %21, %25 : vector<16x64xf32>
    %c1_22 = arith.constant 1 : index
    %c0_23 = arith.constant 0 : index
    %27 = vector.load %arg14[%c1_22, %c0_23] : memref<18x72xf32, #tpu.memory_space<vmem>>, vector<16x64xf32>
    %c3 = arith.constant 3 : index
    %c0_24 = arith.constant 0 : index
    %28 = vector.load %arg3[%c3, %c0_24] : memref<9x64xf32, #tpu.memory_space<vmem>>, vector<1x64xf32>
    %29 = vector.broadcast %28 : vector<1x64xf32> to vector<16x64xf32>
    %30 = arith.mulf %27, %29 : vector<16x64xf32>
    %31 = arith.addf %26, %30 : vector<16x64xf32>
    %c1_25 = arith.constant 1 : index
    %c4_26 = arith.constant 4 : index
    %32 = vector.load %arg14[%c1_25, %c4_26] : memref<18x72xf32, #tpu.memory_space<vmem>>, vector<16x64xf32>
    %c4_27 = arith.constant 4 : index
    %c0_28 = arith.constant 0 : index
    %33 = vector.load %arg3[%c4_27, %c0_28] : memref<9x64xf32, #tpu.memory_space<vmem>>, vector<1x64xf32>
    %34 = vector.broadcast %33 : vector<1x64xf32> to vector<16x64xf32>
    %35 = arith.mulf %32, %34 : vector<16x64xf32>
    %36 = arith.addf %31, %35 : vector<16x64xf32>
    %c1_29 = arith.constant 1 : index
    %c8_30 = arith.constant 8 : index
    %37 = vector.load %arg14[%c1_29, %c8_30] : memref<18x72xf32, #tpu.memory_space<vmem>>, vector<16x64xf32>
    %c5 = arith.constant 5 : index
    %c0_31 = arith.constant 0 : index
    %38 = vector.load %arg3[%c5, %c0_31] : memref<9x64xf32, #tpu.memory_space<vmem>>, vector<1x64xf32>
    %39 = vector.broadcast %38 : vector<1x64xf32> to vector<16x64xf32>
    %40 = arith.mulf %37, %39 : vector<16x64xf32>
    %41 = arith.addf %36, %40 : vector<16x64xf32>
    %c2_32 = arith.constant 2 : index
    %c0_33 = arith.constant 0 : index
    %42 = vector.load %arg14[%c2_32, %c0_33] : memref<18x72xf32, #tpu.memory_space<vmem>>, vector<16x64xf32>
    %c6 = arith.constant 6 : index
    %c0_34 = arith.constant 0 : index
    %43 = vector.load %arg3[%c6, %c0_34] : memref<9x64xf32, #tpu.memory_space<vmem>>, vector<1x64xf32>
    %44 = vector.broadcast %43 : vector<1x64xf32> to vector<16x64xf32>
    %45 = arith.mulf %42, %44 : vector<16x64xf32>
    %46 = arith.addf %41, %45 : vector<16x64xf32>
    %c2_35 = arith.constant 2 : index
    %c4_36 = arith.constant 4 : index
    %47 = vector.load %arg14[%c2_35, %c4_36] : memref<18x72xf32, #tpu.memory_space<vmem>>, vector<16x64xf32>
    %c7 = arith.constant 7 : index
    %c0_37 = arith.constant 0 : index
    %48 = vector.load %arg3[%c7, %c0_37] : memref<9x64xf32, #tpu.memory_space<vmem>>, vector<1x64xf32>
    %49 = vector.broadcast %48 : vector<1x64xf32> to vector<16x64xf32>
    %50 = arith.mulf %47, %49 : vector<16x64xf32>
    %51 = arith.addf %46, %50 : vector<16x64xf32>
    %c2_38 = arith.constant 2 : index
    %c8_39 = arith.constant 8 : index
    %52 = vector.load %arg14[%c2_38, %c8_39] : memref<18x72xf32, #tpu.memory_space<vmem>>, vector<16x64xf32>
    %c8_40 = arith.constant 8 : index
    %c0_41 = arith.constant 0 : index
    %53 = vector.load %arg3[%c8_40, %c0_41] : memref<9x64xf32, #tpu.memory_space<vmem>>, vector<1x64xf32>
    %54 = vector.broadcast %53 : vector<1x64xf32> to vector<16x64xf32>
    %55 = arith.mulf %52, %54 : vector<16x64xf32>
    %56 = arith.addf %51, %55 : vector<16x64xf32>
    %c0_42 = arith.constant 0 : index
    %c0_43 = arith.constant 0 : index
    %c0_44 = arith.constant 0 : index
    %57 = vector.load %arg2[%c0_42, %c0_43, %c0_44] : memref<1x1x64xf32, #tpu.memory_space<vmem>>, vector<1x1x64xf32>
    %58 = vector.shape_cast %57 : vector<1x1x64xf32> to vector<1x64xf32>
    %59 = vector.broadcast %58 : vector<1x64xf32> to vector<16x64xf32>
    %60 = arith.mulf %56, %59 : vector<16x64xf32>
    %61 = arith.truncf %60 : vector<16x64xf32> to vector<16x64xbf16>
    %c0_45 = arith.constant 0 : index
    %c0_46 = arith.constant 0 : index
    %62 = vector.load %arg4[%c0_45, %c0_46] : memref<64x256xbf16, #tpu.memory_space<vmem>>, vector<64x256xbf16>
    %cst_47 = arith.constant dense<0.000000e+00> : vector<16x256xf32>
    %63 = tpu.matmul %61, %62, %cst_47 {dimension_numbers = #tpu.dot_dimension_numbers<[1], [0], [0], [1], [0, 0, 1, 1], [], []>} : vector<16x64xbf16>, vector<64x256xbf16>, vector<16x256xf32> -> vector<16x256xf32>
    %c0_48 = arith.constant 0 : index
    %c0_49 = arith.constant 0 : index
    %64 = vector.load %arg5[%c0_48, %c0_49] : memref<1x256xf32, #tpu.memory_space<vmem>>, vector<1x256xf32>
    %65 = vector.broadcast %64 : vector<1x256xf32> to vector<16x256xf32>
    %66 = arith.addf %63, %65 : vector<16x256xf32>
    %67 = arith.negf %66 : vector<16x256xf32>
    %68 = math.exp %67 : vector<16x256xf32>
    %cst_50 = arith.constant 1.000000e+00 : f32
    %69 = vector.broadcast %cst_50 : f32 to vector<16x256xf32>
    %70 = arith.addf %69, %68 : vector<16x256xf32>
    %71 = arith.divf %69, %70 : vector<16x256xf32>
    %72 = arith.mulf %66, %71 : vector<16x256xf32>
    %73 = arith.truncf %72 : vector<16x256xf32> to vector<16x256xbf16>
    %c0_51 = arith.constant 0 : index
    %c0_52 = arith.constant 0 : index
    %74 = vector.load %arg6[%c0_51, %c0_52] : memref<256x128xbf16, #tpu.memory_space<vmem>>, vector<256x128xbf16>
    %cst_53 = arith.constant dense<0.000000e+00> : vector<16x128xf32>
    %75 = tpu.matmul %73, %74, %cst_53 {dimension_numbers = #tpu.dot_dimension_numbers<[1], [0], [0], [1], [0, 0, 1, 1], [], []>} : vector<16x256xbf16>, vector<256x128xbf16>, vector<16x128xf32> -> vector<16x128xf32>
    %c0_54 = arith.constant 0 : index
    %c0_55 = arith.constant 0 : index
    %76 = vector.load %arg7[%c0_54, %c0_55] : memref<1x128xf32, #tpu.memory_space<vmem>>, vector<1x128xf32>
    %77 = vector.broadcast %76 : vector<1x128xf32> to vector<16x128xf32>
    %78 = arith.addf %75, %77 : vector<16x128xf32>
    %c0_56 = arith.constant 0 : index
    %c0_57 = arith.constant 0 : index
    %79 = vector.load %arg8[%c0_56, %c0_57] : memref<32x16xf32, #tpu.memory_space<vmem>>, vector<32x16xf32>
    %cst_58 = arith.constant dense<0.000000e+00> : vector<32x128xf32>
    %80 = tpu.matmul %79, %78, %cst_58 {dimension_numbers = #tpu.dot_dimension_numbers<[1], [0], [0], [1], [0, 0, 1, 1], [], []>} : vector<32x16xf32>, vector<16x128xf32>, vector<32x128xf32> -> vector<32x128xf32>
    %cst_59 = arith.constant 0.000000e+00 : f32
    %81 = vector.broadcast %cst_59 : f32 to vector<1x128xf32>
    %c0_60 = arith.constant 0 : index
    %c0_61 = arith.constant 0 : index
    %82 = vector.load %arg15[%c0_60, %c0_61] : memref<34x128xf32, #tpu.memory_space<vmem>>, vector<1x128xf32>
    tpu.vector_store %arg15[%c0_60, %c0_61], %81 {strides = array<i32>} : memref<34x128xf32, #tpu.memory_space<vmem>>, vector<1x128xf32>,
    %cst_62 = arith.constant 0.000000e+00 : f32
    %83 = vector.broadcast %cst_62 : f32 to vector<1x128xf32>
    %c33 = arith.constant 33 : index
    %c0_63 = arith.constant 0 : index
    %84 = vector.load %arg15[%c33, %c0_63] : memref<34x128xf32, #tpu.memory_space<vmem>>, vector<1x128xf32>
    tpu.vector_store %arg15[%c33, %c0_63], %83 {strides = array<i32>} : memref<34x128xf32, #tpu.memory_space<vmem>>, vector<1x128xf32>,
    %c1_64 = arith.constant 1 : index
    %c0_65 = arith.constant 0 : index
    %85 = vector.load %arg15[%c1_64, %c0_65] : memref<34x128xf32, #tpu.memory_space<vmem>>, vector<32x128xf32>
    tpu.vector_store %arg15[%c1_64, %c0_65], %80 {strides = array<i32>} : memref<34x128xf32, #tpu.memory_space<vmem>>, vector<32x128xf32>,
    %cst_66 = arith.constant 0.000000e+00 : f32
    %86 = vector.broadcast %cst_66 : f32 to vector<32x256xf32>
    %c0_67 = arith.constant 0 : index
    %c0_68 = arith.constant 0 : index
    %87 = vector.load %arg15[%c0_67, %c0_68] : memref<34x128xf32, #tpu.memory_space<vmem>>, vector<32x128xf32>
    %88 = arith.truncf %87 : vector<32x128xf32> to vector<32x128xbf16>
    %c0_69 = arith.constant 0 : index
    %c0_70 = arith.constant 0 : index
    %c0_71 = arith.constant 0 : index
    %89 = vector.load %arg9[%c0_69, %c0_70, %c0_71] : memref<3x128x256xbf16, #tpu.memory_space<vmem>>, vector<1x128x256xbf16>
    %90 = vector.shape_cast %89 : vector<1x128x256xbf16> to vector<128x256xbf16>
    %cst_72 = arith.constant dense<0.000000e+00> : vector<32x256xf32>
    %91 = tpu.matmul %88, %90, %cst_72 {dimension_numbers = #tpu.dot_dimension_numbers<[1], [0], [0], [1], [0, 0, 1, 1], [], []>} : vector<32x128xbf16>, vector<128x256xbf16>, vector<32x256xf32> -> vector<32x256xf32>
    %92 = arith.addf %86, %91 : vector<32x256xf32>
    %c1_73 = arith.constant 1 : index
    %c0_74 = arith.constant 0 : index
    %93 = vector.load %arg15[%c1_73, %c0_74] : memref<34x128xf32, #tpu.memory_space<vmem>>, vector<32x128xf32>
    %94 = arith.truncf %93 : vector<32x128xf32> to vector<32x128xbf16>
    %c1_75 = arith.constant 1 : index
    %c0_76 = arith.constant 0 : index
    %c0_77 = arith.constant 0 : index
    %95 = vector.load %arg9[%c1_75, %c0_76, %c0_77] : memref<3x128x256xbf16, #tpu.memory_space<vmem>>, vector<1x128x256xbf16>
    %96 = vector.shape_cast %95 : vector<1x128x256xbf16> to vector<128x256xbf16>
    %cst_78 = arith.constant dense<0.000000e+00> : vector<32x256xf32>
    %97 = tpu.matmul %94, %96, %cst_78 {dimension_numbers = #tpu.dot_dimension_numbers<[1], [0], [0], [1], [0, 0, 1, 1], [], []>} : vector<32x128xbf16>, vector<128x256xbf16>, vector<32x256xf32> -> vector<32x256xf32>
    %98 = arith.addf %92, %97 : vector<32x256xf32>
    %c2_79 = arith.constant 2 : index
    %c0_80 = arith.constant 0 : index
    %99 = vector.load %arg15[%c2_79, %c0_80] : memref<34x128xf32, #tpu.memory_space<vmem>>, vector<32x128xf32>
    %100 = arith.truncf %99 : vector<32x128xf32> to vector<32x128xbf16>
    %c2_81 = arith.constant 2 : index
    %c0_82 = arith.constant 0 : index
    %c0_83 = arith.constant 0 : index
    %101 = vector.load %arg9[%c2_81, %c0_82, %c0_83] : memref<3x128x256xbf16, #tpu.memory_space<vmem>>, vector<1x128x256xbf16>
    %102 = vector.shape_cast %101 : vector<1x128x256xbf16> to vector<128x256xbf16>
    %cst_84 = arith.constant dense<0.000000e+00> : vector<32x256xf32>
    %103 = tpu.matmul %100, %102, %cst_84 {dimension_numbers = #tpu.dot_dimension_numbers<[1], [0], [0], [1], [0, 0, 1, 1], [], []>} : vector<32x128xbf16>, vector<128x256xbf16>, vector<32x256xf32> -> vector<32x256xf32>
    %104 = arith.addf %98, %103 : vector<32x256xf32>
    %c0_85 = arith.constant 0 : index
    %c0_86 = arith.constant 0 : index
    %105 = vector.load %arg10[%c0_85, %c0_86] : memref<1x256xf32, #tpu.memory_space<vmem>>, vector<1x256xf32>
    %106 = vector.broadcast %105 : vector<1x256xf32> to vector<32x256xf32>
    %107 = arith.addf %104, %106 : vector<32x256xf32>
    %108 = arith.negf %107 : vector<32x256xf32>
    %109 = math.exp %108 : vector<32x256xf32>
    %cst_87 = arith.constant 1.000000e+00 : f32
    %110 = vector.broadcast %cst_87 : f32 to vector<32x256xf32>
    %111 = arith.addf %110, %109 : vector<32x256xf32>
    %112 = arith.divf %110, %111 : vector<32x256xf32>
    %113 = arith.mulf %107, %112 : vector<32x256xf32>
    %c0_88 = arith.constant 0 : index
    %c0_89 = arith.constant 0 : index
    %114 = vector.load %arg11[%c0_88, %c0_89] : memref<1x256xf32, #tpu.memory_space<vmem>>, vector<1x256xf32>
    %115 = vector.broadcast %114 : vector<1x256xf32> to vector<32x256xf32>
    %116 = arith.mulf %113, %115 : vector<32x256xf32>
    %c0_90 = arith.constant 0 : index
    %c0_91 = arith.constant 0 : index
    %117 = vector.load %arg12[%c0_90, %c0_91] : memref<1x256xf32, #tpu.memory_space<vmem>>, vector<1x256xf32>
    %118 = vector.broadcast %117 : vector<1x256xf32> to vector<32x256xf32>
    %119 = arith.addf %116, %118 : vector<32x256xf32>
    %c0_92 = arith.constant 0 : index
    %c0_93 = arith.constant 0 : index
    %c0_94 = arith.constant 0 : index
    %120 = vector.load %arg13[%c0_92, %c0_93, %c0_94] : memref<1x32x256xf32, #tpu.memory_space<vmem>>, vector<1x32x256xf32>
    %121 = vector.shape_cast %120 : vector<1x32x256xf32> to vector<32x256xf32>
    %122 = vector.shape_cast %119 : vector<32x256xf32> to vector<1x32x256xf32>
    tpu.vector_store %arg13[%c0_92, %c0_93, %c0_94], %122 {strides = array<i32>} : memref<1x32x256xf32, #tpu.memory_space<vmem>>, vector<1x32x256xf32>,
    return
  }
  func.func @transform_0(%arg0: i32) -> (i32, i32, i32) {
    %c0_i32 = arith.constant 0 : i32
    %c0_i32_0 = arith.constant 0 : i32
    %c0_i32_1 = arith.constant 0 : i32
    return %arg0, %c0_i32, %c0_i32_0 : i32, i32, i32
  }
  func.func @transform_1(%arg0: i32) -> (i32, i32, i32) {
    %c0_i32 = arith.constant 0 : i32
    %c0_i32_0 = arith.constant 0 : i32
    %c0_i32_1 = arith.constant 0 : i32
    return %arg0, %c0_i32, %c0_i32_0 : i32, i32, i32
  }
  func.func @transform_2(%arg0: i32) -> (i32, i32) {
    %c0_i32 = arith.constant 0 : i32
    %c0_i32_0 = arith.constant 0 : i32
    %c0_i32_1 = arith.constant 0 : i32
    return %c0_i32, %c0_i32_0 : i32, i32
  }
  func.func @transform_3(%arg0: i32) -> (i32, i32) {
    %c0_i32 = arith.constant 0 : i32
    %c0_i32_0 = arith.constant 0 : i32
    %c0_i32_1 = arith.constant 0 : i32
    return %c0_i32, %c0_i32_0 : i32, i32
  }
  func.func @transform_4(%arg0: i32) -> (i32, i32) {
    %c0_i32 = arith.constant 0 : i32
    %c0_i32_0 = arith.constant 0 : i32
    %c0_i32_1 = arith.constant 0 : i32
    return %c0_i32, %c0_i32_0 : i32, i32
  }
  func.func @transform_5(%arg0: i32) -> (i32, i32) {
    %c0_i32 = arith.constant 0 : i32
    %c0_i32_0 = arith.constant 0 : i32
    %c0_i32_1 = arith.constant 0 : i32
    return %c0_i32, %c0_i32_0 : i32, i32
  }
  func.func @transform_6(%arg0: i32) -> (i32, i32) {
    %c0_i32 = arith.constant 0 : i32
    %c0_i32_0 = arith.constant 0 : i32
    %c0_i32_1 = arith.constant 0 : i32
    return %c0_i32, %c0_i32_0 : i32, i32
  }
  func.func @transform_7(%arg0: i32) -> (i32, i32) {
    %c0_i32 = arith.constant 0 : i32
    %c0_i32_0 = arith.constant 0 : i32
    %c0_i32_1 = arith.constant 0 : i32
    return %c0_i32, %c0_i32_0 : i32, i32
  }
  func.func @transform_8(%arg0: i32) -> (i32, i32, i32) {
    %c0_i32 = arith.constant 0 : i32
    %c0_i32_0 = arith.constant 0 : i32
    %c0_i32_1 = arith.constant 0 : i32
    %c0_i32_2 = arith.constant 0 : i32
    return %c0_i32, %c0_i32_0, %c0_i32_1 : i32, i32, i32
  }
  func.func @transform_9(%arg0: i32) -> (i32, i32) {
    %c0_i32 = arith.constant 0 : i32
    %c0_i32_0 = arith.constant 0 : i32
    %c0_i32_1 = arith.constant 0 : i32
    return %c0_i32, %c0_i32_0 : i32, i32
  }
  func.func @transform_10(%arg0: i32) -> (i32, i32) {
    %c0_i32 = arith.constant 0 : i32
    %c0_i32_0 = arith.constant 0 : i32
    %c0_i32_1 = arith.constant 0 : i32
    return %c0_i32, %c0_i32_0 : i32, i32
  }
  func.func @transform_11(%arg0: i32) -> (i32, i32) {
    %c0_i32 = arith.constant 0 : i32
    %c0_i32_0 = arith.constant 0 : i32
    %c0_i32_1 = arith.constant 0 : i32
    return %c0_i32, %c0_i32_0 : i32, i32
  }
  func.func @transform_12(%arg0: i32) -> (i32, i32, i32) {
    %c0_i32 = arith.constant 0 : i32
    %c0_i32_0 = arith.constant 0 : i32
    %c0_i32_1 = arith.constant 0 : i32
    return %arg0, %c0_i32, %c0_i32_0 : i32, i32, i32
  }
}

</mosaic_0001>

<llo_original>
// kernel: tpu_custom_call.1
$region0: #{tpu_custom_call.1}
  #allocation0 [shape = 'u32[]', space=smem, size = 0x4, offset = 0x4, fixed_abs, tag = 'smem constant byte address 0x4 - core index']
  #allocation1 [shape = 'u32[144,128]{1,0:T(1,128)}', space=vmem, size = 0x12000, scoped, tag = 'internal scratch']
  #allocation2 [shape = 'f32[18,72]{1,0:T(8,128)}', space=vmem, size = 0x3000, scoped, tag = 'scratch operand']
  #allocation3 [shape = 'f32[34,128]{1,0:T(8,128)}', space=vmem, size = 0x5000, scoped, tag = 'scratch operand']
  %s0 = inlined_call_operand.vmem [shape: f32[2,16,64], index: 0, kind: input, shape index: {}]
  %s1 = inlined_call_operand.hbm [shape: f32[2,1,64], index: 1, kind: input, shape index: {}]
  %s2 = inlined_call_operand.vmem [shape: f32[9,64], index: 2, kind: input, shape index: {}]
  %s3 = inlined_call_operand.hbm [shape: bf16[64,256], index: 3, kind: input, shape index: {}]
  %s4 = inlined_call_operand.vmem [shape: f32[1,256], index: 4, kind: input, shape index: {}]
  %s5 = inlined_call_operand.hbm [shape: bf16[256,128], index: 5, kind: input, shape index: {}]
  %s6 = inlined_call_operand.vmem [shape: f32[1,128], index: 6, kind: input, shape index: {}]
  %s7 = inlined_call_operand.vmem [shape: f32[32,16], index: 7, kind: input, shape index: {}]
  %s8 = inlined_call_operand.hbm [shape: bf16[3,128,256], index: 8, kind: input, shape index: {}]
  %s9 = inlined_call_operand.vmem [shape: f32[1,256], index: 9, kind: input, shape index: {}]
  %s10 = inlined_call_operand.vmem [shape: f32[1,256], index: 10, kind: input, shape index: {}]
  %s11 = inlined_call_operand.vmem [shape: f32[1,256], index: 11, kind: input, shape index: {}]
  %s12 = inlined_call_operand.hbm [shape: f32[2,32,256], index: 12, kind: output, shape index: {}]
  %s13 = sld [smem:[#allocation0]]
  $region97: #{tpu_custom_call.1} parent=0
    _
  %s15 = ssub.s32 1, %s13
  %s16 = scalar_select 0, %s15, %s13
  $region1: #{tpu_custom_call.1} parent=0
    #allocation4 [shape = 'u8[1024]{0}', space=vmem, size = 0x400, scoped, tag = 'input window, operand 1']
    #allocation5 [shape = 's32[2]{0}', space=sflag, size = 0x8, scoped, tag = 'scoped memory for tpu_custom_call.1']
    #allocation6 [shape = 's32[2]{0}', space=sflag, size = 0x8, scoped, tag = 'scoped memory for tpu_custom_call.1']
    #allocation7 [shape = 'u8[32768]{0}', space=vmem, size = 0x8000, scoped, tag = 'input window, operand 3, single buffered']
    #allocation8 [shape = 's32[1]{0}', space=sflag, size = 0x4, scoped, tag = 'scoped memory for tpu_custom_call.1']
    #allocation9 [shape = 'u8[65536]{0}', space=vmem, size = 0x10000, scoped, tag = 'input window, operand 5, single buffered']
    #allocation10 [shape = 'u8[196608]{0}', space=vmem, size = 0x30000, scoped, tag = 'input window, operand 8, single buffered']
    #allocation11 [shape = 's32[1]{0}', space=sflag, size = 0x4, scoped, tag = 'scoped memory for tpu_custom_call.1']
    #allocation12 [shape = 'u8[65536]{0}', space=vmem, size = 0x10000, scoped, tag = 'output window, operand 0']
    %17 = vsyncpa [#allocation5], 0
    %s18 = scalar_lea.sflag [#allocation5], 1
    %19 = vsyncpa %s18, 0
    %20 = vsyncpa [#allocation8], 0
    %21 = vsyncpa [#allocation11], 0
    %22 = vsyncpa [#allocation6], 0
    %s23 = scalar_lea.sflag [#allocation6], 1
    %24 = vsyncpa %s23, 0
    loop: start=0, step=1, limit=4
    $region2: #{tpu_custom_call.1} parent=1 // loop_pre_header
      _
    $region3: #{tpu_custom_call.1} parent=1 // loop_header
      %s26 = sphi 0, %s30
      %p27 = scmp.ge.s32.totalorder %s26, 4
      %s36 = sphi 0, %s38
      %s39 = sphi 0, %s36
      %s40 = sphi 0, %s39
      %s56 = sphi 0, %s40
      %s62 = sphi 0, %s64
      %s65 = sphi 0, %s62
      %s66 = sphi 0, %s65
      %s82 = sphi 0, %s66
      %s86 = sphi 0, %s86
      %s88 = sphi 0, %s86
      %s89 = sphi 0, %s88
      %s103 = sphi 0, %s89
      %s107 = sphi 0, %s107
      %s109 = sphi 0, %s107
      %s110 = sphi 0, %s109
      %s124 = sphi 0, %s110
      %s128 = sphi 0, %s128
      %s130 = sphi 0, %s128
      %s131 = sphi 0, %s130
      %s145 = sphi 0, %s131
      %s149 = sphi 0, %s149
      %s151 = sphi 0, %s149
      %s152 = sphi 0, %s151
      %s166 = sphi 0, %s152
      %s170 = sphi 0, %s170
      %s172 = sphi 0, %s170
      %s173 = sphi 0, %s172
      %s187 = sphi 0, %s173
      %s191 = sphi 0, %s191
      %s193 = sphi 0, %s191
      %s194 = sphi 0, %s193
      %s208 = sphi 0, %s194
      %s212 = sphi 0, %s212
      %s214 = sphi 0, %s212
      %s215 = sphi 0, %s214
      %s229 = sphi 0, %s215
      %s233 = sphi 0, %s233
      %s235 = sphi 0, %s233
      %s236 = sphi 0, %s235
      %s250 = sphi 0, %s236
      %s254 = sphi 0, %s254
      %s256 = sphi 0, %s254
      %s257 = sphi 0, %s256
      %s271 = sphi 0, %s257
      %s275 = sphi 0, %s275
      %s277 = sphi 0, %s275
      %s278 = sphi 0, %s277
      %s292 = sphi 0, %s278
      %s298 = sphi 0, %s300
      %s301 = sphi 0, %s298
      %s302 = sphi 0, %s301
      %s318 = sphi 0, %s302
    $region4: #{tpu_custom_call.1} parent=1 // loop_header_branch
      %29 = sbr.rel (%p27) target = $region8
    $region5: #{tpu_custom_call.1} parent=1 // loop_body
      %s31 = ssub.s32 %s26, 1
      %s32 = ssub.s32 %s26, 2
      %s33 = sadd.s32 %s26, 1
      %s34 = ssub.s32 %s26, %s33
      %p35 = scmp.eq.s32.totalorder %s34, 0
      %s37 = sadd.s32 %s36, 1
      %s38 = scalar_select %p35, %s36, %s37
      %p41 = pneg %p35
      %p42 = scmp.eq.s32.totalorder %s26, 1
      %p43 = por %p41, %p42
      %p44 = scmp.ne.s32.totalorder %s36, %s39
      %p45 = scmp.eq.s32.totalorder %s26, 0
      %p46 = por %p44, %p45
      %p47 = scmp.ne.s32.totalorder %s36, %s39
      %p48 = scmp.eq.s32.totalorder %s31, 1
      %p49 = por %p47, %p48
      %p50 = scmp.ne.s32.totalorder %s39, %s40
      %p51 = scmp.eq.s32.totalorder %s31, 0
      %p52 = por %p50, %p51
      %p53 = scmp.ne.s32.totalorder %s39, %s40
      %p54 = scmp.eq.s32.totalorder %s32, 1
      %p55 = por %p53, %p54
      %p57 = scmp.ne.s32.totalorder %s40, %s56
      %p58 = scmp.eq.s32.totalorder %s32, 0
      %p59 = por %p57, %p58
      %s60 = ssub.s32 %s26, %s33
      %p61 = scmp.eq.s32.totalorder %s60, 0
      %s63 = sadd.s32 %s62, 1
      %s64 = scalar_select %p61, %s62, %s63
      %p67 = pneg %p61
      %p68 = scmp.eq.s32.totalorder %s26, 1
      %p69 = por %p67, %p68
      %p70 = scmp.ne.s32.totalorder %s62, %s65
      %p71 = scmp.eq.s32.totalorder %s26, 0
      %p72 = por %p70, %p71
      %p73 = scmp.ne.s32.totalorder %s62, %s65
      %p74 = scmp.eq.s32.totalorder %s31, 1
      %p75 = por %p73, %p74
      %p76 = scmp.ne.s32.totalorder %s65, %s66
      %p77 = scmp.eq.s32.totalorder %s31, 0
      %p78 = por %p76, %p77
      %p79 = scmp.ne.s32.totalorder %s65, %s66
      %p80 = scmp.eq.s32.totalorder %s32, 1
      %p81 = por %p79, %p80
      %p83 = scmp.ne.s32.totalorder %s66, %s82
      %p84 = scmp.eq.s32.totalorder %s32, 0
      %p85 = por %p83, %p84
      %s87 = sadd.s32 %s86, 1
      %p90 = scmp.eq.s32.totalorder %s26, 1
      %p91 = scmp.ne.s32.totalorder %s86, %s88
      %p92 = scmp.eq.s32.totalorder %s26, 0
      %p93 = por %p91, %p92
      %p94 = scmp.ne.s32.totalorder %s86, %s88
      %p95 = scmp.eq.s32.totalorder %s31, 1
      %p96 = por %p94, %p95
      %p97 = scmp.ne.s32.totalorder %s88, %s89
      %p98 = scmp.eq.s32.totalorder %s31, 0
      %p99 = por %p97, %p98
      %p100 = scmp.ne.s32.totalorder %s88, %s89
      %p101 = scmp.eq.s32.totalorder %s32, 1
      %p102 = por %p100, %p101
      %p104 = scmp.ne.s32.totalorder %s89, %s103
      %p105 = scmp.eq.s32.totalorder %s32, 0
      %p106 = por %p104, %p105
      %s108 = sadd.s32 %s107, 1
      %p111 = scmp.eq.s32.totalorder %s26, 1
      %p112 = scmp.ne.s32.totalorder %s107, %s109
      %p113 = scmp.eq.s32.totalorder %s26, 0
      %p114 = por %p112, %p113
      %p115 = scmp.ne.s32.totalorder %s107, %s109
      %p116 = scmp.eq.s32.totalorder %s31, 1
      %p117 = por %p115, %p116
      %p118 = scmp.ne.s32.totalorder %s109, %s110
      %p119 = scmp.eq.s32.totalorder %s31, 0
      %p120 = por %p118, %p119
      %p121 = scmp.ne.s32.totalorder %s109, %s110
      %p122 = scmp.eq.s32.totalorder %s32, 1
      %p123 = por %p121, %p122
      %p125 = scmp.ne.s32.totalorder %s110, %s124
      %p126 = scmp.eq.s32.totalorder %s32, 0
      %p127 = por %p125, %p126
      %s129 = sadd.s32 %s128, 1
      %p132 = scmp.eq.s32.totalorder %s26, 1
      %p133 = scmp.ne.s32.totalorder %s128, %s130
      %p134 = scmp.eq.s32.totalorder %s26, 0
      %p135 = por %p133, %p134
      %p136 = scmp.ne.s32.totalorder %s128, %s130
      %p137 = scmp.eq.s32.totalorder %s31, 1
      %p138 = por %p136, %p137
      %p139 = scmp.ne.s32.totalorder %s130, %s131
      %p140 = scmp.eq.s32.totalorder %s31, 0
      %p141 = por %p139, %p140
      %p142 = scmp.ne.s32.totalorder %s130, %s131
      %p143 = scmp.eq.s32.totalorder %s32, 1
      %p144 = por %p142, %p143
      %p146 = scmp.ne.s32.totalorder %s131, %s145
      %p147 = scmp.eq.s32.totalorder %s32, 0
      %p148 = por %p146, %p147
      %s150 = sadd.s32 %s149, 1
      %p153 = scmp.eq.s32.totalorder %s26, 1
      %p154 = scmp.ne.s32.totalorder %s149, %s151
      %p155 = scmp.eq.s32.totalorder %s26, 0
      %p156 = por %p154, %p155
      %p157 = scmp.ne.s32.totalorder %s149, %s151
      %p158 = scmp.eq.s32.totalorder %s31, 1
      %p159 = por %p157, %p158
      %p160 = scmp.ne.s32.totalorder %s151, %s152
      %p161 = scmp.eq.s32.totalorder %s31, 0
      %p162 = por %p160, %p161
      %p163 = scmp.ne.s32.totalorder %s151, %s152
      %p164 = scmp.eq.s32.totalorder %s32, 1
      %p165 = por %p163, %p164
      %p167 = scmp.ne.s32.totalorder %s152, %s166
      %p168 = scmp.eq.s32.totalorder %s32, 0
      %p169 = por %p167, %p168
      %s171 = sadd.s32 %s170, 1
      %p174 = scmp.eq.s32.totalorder %s26, 1
      %p175 = scmp.ne.s32.totalorder %s170, %s172
      %p176 = scmp.eq.s32.totalorder %s26, 0
      %p177 = por %p175, %p176
      %p178 = scmp.ne.s32.totalorder %s170, %s172
      %p179 = scmp.eq.s32.totalorder %s31, 1
      %p180 = por %p178, %p179
      %p181 = scmp.ne.s32.totalorder %s172, %s173
      %p182 = scmp.eq.s32.totalorder %s31, 0
      %p183 = por %p181, %p182
      %p184 = scmp.ne.s32.totalorder %s172, %s173
      %p185 = scmp.eq.s32.totalorder %s32, 1
      %p186 = por %p184, %p185
      %p188 = scmp.ne.s32.totalorder %s173, %s187
      %p189 = scmp.eq.s32.totalorder %s32, 0
      %p190 = por %p188, %p189
      %s192 = sadd.s32 %s191, 1
      %p195 = scmp.eq.s32.totalorder %s26, 1
      %p196 = scmp.ne.s32.totalorder %s191, %s193
      %p197 = scmp.eq.s32.totalorder %s26, 0
      %p198 = por %p196, %p197
      %p199 = scmp.ne.s32.totalorder %s191, %s193
      %p200 = scmp.eq.s32.totalorder %s31, 1
      %p201 = por %p199, %p200
      %p202 = scmp.ne.s32.totalorder %s193, %s194
      %p203 = scmp.eq.s32.totalorder %s31, 0
      %p204 = por %p202, %p203
      %p205 = scmp.ne.s32.totalorder %s193, %s194
      %p206 = scmp.eq.s32.totalorder %s32, 1
      %p207 = por %p205, %p206
      %p209 = scmp.ne.s32.totalorder %s194, %s208
      %p210 = scmp.eq.s32.totalorder %s32, 0
      %p211 = por %p209, %p210
      %s213 = sadd.s32 %s212, 1
      %p216 = scmp.eq.s32.totalorder %s26, 1
      %p217 = scmp.ne.s32.totalorder %s212, %s214
      %p218 = scmp.eq.s32.totalorder %s26, 0
      %p219 = por %p217, %p218
      %p220 = scmp.ne.s32.totalorder %s212, %s214
      %p221 = scmp.eq.s32.totalorder %s31, 1
      %p222 = por %p220, %p221
      %p223 = scmp.ne.s32.totalorder %s214, %s215
      %p224 = scmp.eq.s32.totalorder %s31, 0
      %p225 = por %p223, %p224
      %p226 = scmp.ne.s32.totalorder %s214, %s215
      %p227 = scmp.eq.s32.totalorder %s32, 1
      %p228 = por %p226, %p227
      %p230 = scmp.ne.s32.totalorder %s215, %s229
      %p231 = scmp.eq.s32.totalorder %s32, 0
      %p232 = por %p230, %p231
      %s234 = sadd.s32 %s233, 1
      %p237 = scmp.eq.s32.totalorder %s26, 1
      %p238 = scmp.ne.s32.totalorder %s233, %s235
      %p239 = scmp.eq.s32.totalorder %s26, 0
      %p240 = por %p238, %p239
      %p241 = scmp.ne.s32.totalorder %s233, %s235
      %p242 = scmp.eq.s32.totalorder %s31, 1
      %p243 = por %p241, %p242
      %p244 = scmp.ne.s32.totalorder %s235, %s236
      %p245 = scmp.eq.s32.totalorder %s31, 0
      %p246 = por %p244, %p245
      %p247 = scmp.ne.s32.totalorder %s235, %s236
      %p248 = scmp.eq.s32.totalorder %s32, 1
      %p249 = por %p247, %p248
      %p251 = scmp.ne.s32.totalorder %s236, %s250
      %p252 = scmp.eq.s32.totalorder %s32, 0
      %p253 = por %p251, %p252
      %s255 = sadd.s32 %s254, 1
      %p258 = scmp.eq.s32.totalorder %s26, 1
      %p259 = scmp.ne.s32.totalorder %s254, %s256
      %p260 = scmp.eq.s32.totalorder %s26, 0
      %p261 = por %p259, %p260
      %p262 = scmp.ne.s32.totalorder %s254, %s256
      %p263 = scmp.eq.s32.totalorder %s31, 1
      %p264 = por %p262, %p263
      %p265 = scmp.ne.s32.totalorder %s256, %s257
      %p266 = scmp.eq.s32.totalorder %s31, 0
      %p267 = por %p265, %p266
      %p268 = scmp.ne.s32.totalorder %s256, %s257
      %p269 = scmp.eq.s32.totalorder %s32, 1
      %p270 = por %p268, %p269
      %p272 = scmp.ne.s32.totalorder %s257, %s271
      %p273 = scmp.eq.s32.totalorder %s32, 0
      %p274 = por %p272, %p273
      %s276 = sadd.s32 %s275, 1
      %p279 = scmp.eq.s32.totalorder %s26, 1
      %p280 = scmp.ne.s32.totalorder %s275, %s277
      %p281 = scmp.eq.s32.totalorder %s26, 0
      %p282 = por %p280, %p281
      %p283 = scmp.ne.s32.totalorder %s275, %s277
      %p284 = scmp.eq.s32.totalorder %s31, 1
      %p285 = por %p283, %p284
      %p286 = scmp.ne.s32.totalorder %s277, %s278
      %p287 = scmp.eq.s32.totalorder %s31, 0
      %p288 = por %p286, %p287
      %p289 = scmp.ne.s32.totalorder %s277, %s278
      %p290 = scmp.eq.s32.totalorder %s32, 1
      %p291 = por %p289, %p290
      %p293 = scmp.ne.s32.totalorder %s278, %s292
      %p294 = scmp.eq.s32.totalorder %s32, 0
      %p295 = por %p293, %p294
      %s296 = ssub.s32 %s26, %s33
      %p297 = scmp.eq.s32.totalorder %s296, 0
      %s299 = sadd.s32 %s298, 1
      %s300 = scalar_select %p297, %s298, %s299
      %p303 = pneg %p297
      %p304 = scmp.eq.s32.totalorder %s26, 1
      %p305 = por %p303, %p304
      %p306 = scmp.ne.s32.totalorder %s298, %s301
      %p307 = scmp.eq.s32.totalorder %s26, 0
      %p308 = por %p306, %p307
      %p309 = scmp.ne.s32.totalorder %s298, %s301
      %p310 = scmp.eq.s32.totalorder %s31, 1
      %p311 = por %p309, %p310
      %p312 = scmp.ne.s32.totalorder %s301, %s302
      %p313 = scmp.eq.s32.totalorder %s31, 0
      %p314 = por %p312, %p313
      %p315 = scmp.ne.s32.totalorder %s301, %s302
      %p316 = scmp.eq.s32.totalorder %s32, 1
      %p317 = por %p315, %p316
      %p319 = scmp.ne.s32.totalorder %s302, %s318
      %p320 = scmp.eq.s32.totalorder %s32, 0
      %p321 = por %p319, %p320
      %p322 = scmp.le.s32.totalorder 1, %s26
      %p323 = scmp.lt.s32.totalorder %s26, 3
      %p324 = pnand %p322, %p323
      %p325 = pneg %p324
      // Predicated region
      $region9: #{tpu_custom_call.1} parent=5 // pred_check
        _
      $region10: #{tpu_custom_call.1} parent=5 // pred_check_branch
        %327 = sbr.rel (%p324) target = $region12
      $region11: #{tpu_custom_call.1} parent=5 // pred_region
        %s328 = ssub.s32 %s26, 1
        // Predicated region
        $region13: #{tpu_custom_call.1} parent=11 // pred_check
          %p329 = pneg %p99
        $region14: #{tpu_custom_call.1} parent=11 // pred_check_branch
          %331 = sbr.rel (%p329) target = $region16
        $region15: #{tpu_custom_call.1} parent=11 // pred_region
          _
        $region16: #{tpu_custom_call.1} parent=11 // pred_fallthru
          _
        // Predicated region
        $region17: #{tpu_custom_call.1} parent=11 // pred_check
          %p332 = pneg %p120
        $region18: #{tpu_custom_call.1} parent=11 // pred_check_branch
          %334 = sbr.rel (%p332) target = $region20
        $region19: #{tpu_custom_call.1} parent=11 // pred_region
          %s336 = ssub.s32 1024, 1024
          %337 = vsyncadd [#allocation8], %s336
          %s338 = sshll.u32 [#allocation7], 4
          %s339 = int_to_ptr.vmem [resolvable:$true] %s338
          %344 = dma.hbm_to_vmem [thread:$0]  %s3, 1024, %s339, [#allocation8], 128, 128, 8
        $region20: #{tpu_custom_call.1} parent=11 // pred_fallthru
          _
        // Predicated region
        $region21: #{tpu_custom_call.1} parent=11 // pred_check
          %p345 = pneg %p141
        $region22: #{tpu_custom_call.1} parent=11 // pred_check_branch
          %347 = sbr.rel (%p345) target = $region24
        $region23: #{tpu_custom_call.1} parent=11 // pred_region
          _
        $region24: #{tpu_custom_call.1} parent=11 // pred_fallthru
          _
        // Predicated region
        $region25: #{tpu_custom_call.1} parent=11 // pred_check
          %p348 = pneg %p162
        $region26: #{tpu_custom_call.1} parent=11 // pred_check_branch
          %350 = sbr.rel (%p348) target = $region28
        $region27: #{tpu_custom_call.1} parent=11 // pred_region
          %s352 = ssub.s32 2048, 2048
          %353 = vsyncadd [#allocation8], %s352
          %s354 = sshll.u32 [#allocation9], 4
          %s355 = int_to_ptr.vmem [resolvable:$true] %s354
          %360 = dma.hbm_to_vmem [thread:$0]  %s5, 2048, %s355, [#allocation8], 64, 64, 4
        $region28: #{tpu_custom_call.1} parent=11 // pred_fallthru
          _
        // Predicated region
        $region29: #{tpu_custom_call.1} parent=11 // pred_check
          %p361 = pneg %p183
        $region30: #{tpu_custom_call.1} parent=11 // pred_check_branch
          %363 = sbr.rel (%p361) target = $region32
        $region31: #{tpu_custom_call.1} parent=11 // pred_region
          _
        $region32: #{tpu_custom_call.1} parent=11 // pred_fallthru
          _
        // Predicated region
        $region33: #{tpu_custom_call.1} parent=11 // pred_check
          %p364 = pneg %p204
        $region34: #{tpu_custom_call.1} parent=11 // pred_check_branch
          %366 = sbr.rel (%p364) target = $region36
        $region35: #{tpu_custom_call.1} parent=11 // pred_region
          _
        $region36: #{tpu_custom_call.1} parent=11 // pred_fallthru
          _
        // Predicated region
        $region37: #{tpu_custom_call.1} parent=11 // pred_check
          %p367 = pneg %p225
        $region38: #{tpu_custom_call.1} parent=11 // pred_check_branch
          %369 = sbr.rel (%p367) target = $region40
        $region39: #{tpu_custom_call.1} parent=11 // pred_region
          %s371 = ssub.s32 6144, 6144
          %372 = vsyncadd [#allocation11], %s371
          %s373 = sshll.u32 [#allocation10], 4
          %s374 = int_to_ptr.vmem [resolvable:$true] %s373
          %379 = dma.hbm_to_vmem [thread:$0]  %s8, 6144, %s374, [#allocation11], 128, 128, 8
        $region40: #{tpu_custom_call.1} parent=11 // pred_fallthru
          _
        // Predicated region
        $region41: #{tpu_custom_call.1} parent=11 // pred_check
          %p380 = pneg %p246
        $region42: #{tpu_custom_call.1} parent=11 // pred_check_branch
          %382 = sbr.rel (%p380) target = $region44
        $region43: #{tpu_custom_call.1} parent=11 // pred_region
          _
        $region44: #{tpu_custom_call.1} parent=11 // pred_fallthru
          _
        // Predicated region
        $region45: #{tpu_custom_call.1} parent=11 // pred_check
          %p383 = pneg %p267
        $region46: #{tpu_custom_call.1} parent=11 // pred_check_branch
          %385 = sbr.rel (%p383) target = $region48
        $region47: #{tpu_custom_call.1} parent=11 // pred_region
          _
        $region48: #{tpu_custom_call.1} parent=11 // pred_fallthru
          _
        // Predicated region
        $region49: #{tpu_custom_call.1} parent=11 // pred_check
          %p386 = pneg %p288
        $region50: #{tpu_custom_call.1} parent=11 // pred_check_branch
          %388 = sbr.rel (%p386) target = $region52
        $region51: #{tpu_custom_call.1} parent=11 // pred_region
          _
        $region52: #{tpu_custom_call.1} parent=11 // pred_fallthru
          _
      $region12: #{tpu_custom_call.1} parent=5 // pred_fallthru
        _
      %p389 = scmp.lt.s32.totalorder %s26, 2
      // Predicated region
      $region53: #{tpu_custom_call.1} parent=5 // pred_check
        %p390 = pneg %p389
      $region54: #{tpu_custom_call.1} parent=5 // pred_check_branch
        %392 = sbr.rel (%p390) target = $region56
      $region55: #{tpu_custom_call.1} parent=5 // pred_region
        // Predicated region
        $region57: #{tpu_custom_call.1} parent=55 // pred_check
          %p393 = pneg %p46
        $region58: #{tpu_custom_call.1} parent=55 // pred_check_branch
          %395 = sbr.rel (%p393) target = $region60
        $region59: #{tpu_custom_call.1} parent=55 // pred_region
          %p396 = scmp.lt.s32.totalorder %s26, 1
          %s397 = scalar_select %p396, %s26, 1
          %s398 = smul.addr %s397, 2
          %s399 = smul.addr %s398, 8
          %s400 = scalar_lea.vmem %s0, %s399
        $region60: #{tpu_custom_call.1} parent=55 // pred_fallthru
          _
        // Predicated region
        $region61: #{tpu_custom_call.1} parent=55 // pred_check
          %p401 = pneg %p72
        $region62: #{tpu_custom_call.1} parent=55 // pred_check_branch
          %403 = sbr.rel (%p401) target = $region64
        $region63: #{tpu_custom_call.1} parent=55 // pred_region
          %s404 = sand.u32 %s62, 1
          %s405 = scalar_lea.sflag [#allocation5], %s404
          %s406 = sand.u32 %s62, 1
          %s407 = scalar_lea.vmem [#allocation4], %s406
          %s409 = ssub.s32 16, 16
          %410 = vsyncadd %s405, %s409
          %s411 = smul.addr %s26, 16
          %s412 = scalar_lea.hbm %s1, %s411
          %s414 = sshll.u32 %s407, 4
          %s415 = int_to_ptr.vmem [resolvable:$true] %s414
          %417 = dma.hbm_to_vmem [thread:$0]  %s412, 16, %s415, %s405
        $region64: #{tpu_custom_call.1} parent=55 // pred_fallthru
          _
      $region56: #{tpu_custom_call.1} parent=5 // pred_fallthru
        _
      %p418 = scmp.le.s32.totalorder 1, %s26
      %p419 = scmp.lt.s32.totalorder %s26, 3
      %p420 = pnand %p418, %p419
      %p421 = pneg %p420
      // Predicated region
      $region65: #{tpu_custom_call.1} parent=5 // pred_check
        _
      $region66: #{tpu_custom_call.1} parent=5 // pred_check_branch
        %423 = sbr.rel (%p420) target = $region68
      $region67: #{tpu_custom_call.1} parent=5 // pred_region
        %s424 = ssub.s32 %s26, 1
        %s425 = sand.u32 %s65, 1
        %s426 = scalar_lea.sflag [#allocation5], %s425
        %s427 = sand.u32 %s65, 1
        %s428 = scalar_lea.vmem [#allocation4], %s427
        // Predicated region
        $region69: #{tpu_custom_call.1} parent=67 // pred_check
          %p429 = pneg %p78
        $region70: #{tpu_custom_call.1} parent=67 // pred_check_branch
          %431 = sbr.rel (%p429) target = $region72
        $region71: #{tpu_custom_call.1} parent=67 // pred_region
          %432 = dma.done %s426, 16
        $region72: #{tpu_custom_call.1} parent=67 // pred_fallthru
          _
        // Predicated region
        $region73: #{tpu_custom_call.1} parent=67 // pred_check
          %p433 = pneg %p120
        $region74: #{tpu_custom_call.1} parent=67 // pred_check_branch
          %435 = sbr.rel (%p433) target = $region76
        $region75: #{tpu_custom_call.1} parent=67 // pred_region
          %436 = dma.done [#allocation8], 1024
        $region76: #{tpu_custom_call.1} parent=67 // pred_fallthru
          _
        // Predicated region
        $region77: #{tpu_custom_call.1} parent=67 // pred_check
          %p437 = pneg %p162
        $region78: #{tpu_custom_call.1} parent=67 // pred_check_branch
          %439 = sbr.rel (%p437) target = $region80
        $region79: #{tpu_custom_call.1} parent=67 // pred_region
          %440 = dma.done [#allocation8], 2048
        $region80: #{tpu_custom_call.1} parent=67 // pred_fallthru
          _
        // Predicated region
        $region81: #{tpu_custom_call.1} parent=67 // pred_check
          %p441 = pneg %p225
        $region82: #{tpu_custom_call.1} parent=67 // pred_check_branch
          %443 = sbr.rel (%p441) target = $region84
        $region83: #{tpu_custom_call.1} parent=67 // pred_region
          %444 = dma.done [#allocation11], 6144
        $region84: #{tpu_custom_call.1} parent=67 // pred_fallthru
          _
        %p445 = scmp.lt.s32.totalorder %s31, 1
        %s446 = scalar_select %p445, %s31, 1
        %s447 = smul.addr %s446, 2
        %s448 = smul.addr %s447, 8
        %s449 = scalar_lea.vmem %s0, %s448
        %p450 = pneg %p52
        %p451 = pneg %p49
        %s452 = sand.u32 %s65, 1
        %s453 = scalar_lea.sflag [#allocation5], %s452
        %s454 = sand.u32 %s65, 1
        %s455 = scalar_lea.vmem [#allocation4], %s454
        %p456 = pneg %p78
        %p457 = pneg %p75
        %p458 = pneg %p99
        %p459 = pneg %p96
        %p460 = pneg %p120
        %p461 = pneg %p117
        %p462 = pneg %p141
        %p463 = pneg %p138
        %p464 = pneg %p162
        %p465 = pneg %p159
        %p466 = pneg %p183
        %p467 = pneg %p180
        %p468 = pneg %p204
        %p469 = pneg %p201
        %p470 = pneg %p225
        %p471 = pneg %p222
        %p472 = pneg %p246
        %p473 = pneg %p243
        %p474 = pneg %p267
        %p475 = pneg %p264
        %p476 = pneg %p288
        %p477 = pneg %p285
        %p478 = pneg %p314
        %p479 = pneg %p311
        %s480 = sand.u32 %s301, 1
        %s481 = scalar_lea.sflag [#allocation6], %s480
        %s482 = sand.u32 %s301, 1
        %s483 = smul.addr %s482, 64
        %s484 = scalar_lea.vmem [#allocation12], %s483
        %p485 = scmp.lt.s32.totalorder %s31, 1
        %s486 = scalar_select %p485, %s31, 1
        %s487 = smul.addr %s486, 2
        %s488 = smul.addr %s487, 8
        %s489 = scalar_lea.vmem %s0, %s488
        %vm491 = vcmask 581632
        %492 = vst.msk [vmem:[#allocation2] sm:$0x1] %vm491, 0.0
        %493 = vst.msk [vmem:[#allocation2 + $0x11] sm:$0x1] %vm491, 0.0
        %vm494 = vcmask 31744
        %495 = vst.msk [vmem:[#allocation2] sm:$0xff] %vm494, 0.0
        %496 = vst.msk [vmem:[#allocation2 + $0x8] sm:$0xff] %vm494, 0.0
        %vm497 = vcmask 25600
        %498 = vst.msk [vmem:[#allocation2 + $0x10] sm:$0x3] %vm497, 0.0
        %vm499 = vcmask 589344
        %500 = vst.msk [vmem:[#allocation2] sm:$0xff] %vm499, 0.0
        %501 = vst.msk [vmem:[#allocation2 + $0x8] sm:$0xff] %vm499, 0.0
        %vm502 = vcmask 583200
        %503 = vst.msk [vmem:[#allocation2 + $0x10] sm:$0x3] %vm502, 0.0
        %v504 = vld [vmem:[%s489] sm:$0xff]
        %v505 = vld [vmem:[%s489 + $0x8] sm:$0xff]
        %508 = vrot.lane.b32.xlu0 %v504, 4
        %v509 = vpop.permute.xlu0 %508
        %510 = vrot.lane.b32.xlu0 %v505, 4
        %v511 = vpop.permute.xlu0 %510
        %vm514 = vcmask 556064
        %515 = vst.msk [vmem:[#allocation2 + $0x1] sm:$0xff] %vm514, %v509
        %516 = vst.msk [vmem:[#allocation2 + $0x9] sm:$0xff] %vm514, %v511
        %v517 = vld [vmem:[#allocation2] sm:$0xff]
        %v518 = vld [vmem:[#allocation2 + $0x8] sm:$0xff]
        %v519 = vld [vmem:[%s2] sm:$0x1]
        %v520 = vlaneseq
        %v521 = vshrl.u32 %v520, 7
        %v522 = vsub.s32 0, %v521
        %v523 = vrot.slane %v519, %v522
        %v524 = vmul.f32 %v517, %v523
        %v525 = vmul.f32 %v518, %v523
        %v526 = vadd.f32 %v524, 0.0
        %v527 = vadd.f32 %v525, 0.0
        %v528 = vld [vmem:[%s2 + $0x1] sm:$0x1]
        %v529 = vlaneseq
        %v530 = vshrl.u32 %v529, 7
        %v531 = vsub.s32 0, %v530
        %v532 = vrot.slane %v528, %v531
        %534 = vrot.lane.b32.xlu0 %v532, 4
        %v535 = vpop.permute.xlu0 %534
        %v537 = vmul.f32 %v517, %v535
        %v538 = vmul.f32 %v518, %v535
        %541 = vrot.lane.b32.xlu0 %v537, 124
        %v542 = vpop.permute.xlu0 %541
        %543 = vrot.lane.b32.xlu0 %v538, 124
        %v544 = vpop.permute.xlu0 %543
        %v547 = vadd.f32 %v526, %v542
        %v548 = vadd.f32 %v527, %v544
        %v549 = vld [vmem:[%s2 + $0x2] sm:$0x1]
        %v550 = vlaneseq
        %v551 = vshrl.u32 %v550, 7
        %v552 = vsub.s32 0, %v551
        %v553 = vrot.slane %v549, %v552
        %555 = vrot.lane.b32.xlu0 %v553, 8
        %v556 = vpop.permute.xlu0 %555
        %v558 = vmul.f32 %v517, %v556
        %v559 = vmul.f32 %v518, %v556
        %562 = vrot.lane.b32.xlu0 %v558, 120
        %v563 = vpop.permute.xlu0 %562
        %564 = vrot.lane.b32.xlu0 %v559, 120
        %v565 = vpop.permute.xlu0 %564
        %v568 = vadd.f32 %v547, %v563
        %v569 = vadd.f32 %v548, %v565
        %v570 = vld [vmem:[#allocation2 + $0x1] sm:$0xff]
        %v571 = vld [vmem:[#allocation2 + $0x9] sm:$0xff]
        %v572 = vld [vmem:[%s2 + $0x3] sm:$0x1]
        %v573 = vlaneseq
        %v574 = vshrl.u32 %v573, 7
        %v575 = vsub.s32 0, %v574
        %v576 = vrot.slane %v572, %v575
        %v577 = vmul.f32 %v570, %v576
        %v578 = vmul.f32 %v571, %v576
        %v579 = vadd.f32 %v568, %v577
        %v580 = vadd.f32 %v569, %v578
        %v581 = vld [vmem:[%s2 + $0x4] sm:$0x1]
        %v582 = vlaneseq
        %v583 = vshrl.u32 %v582, 7
        %v584 = vsub.s32 0, %v583
        %v585 = vrot.slane %v581, %v584
        %587 = vrot.lane.b32.xlu0 %v585, 4
        %v588 = vpop.permute.xlu0 %587
        %v590 = vmul.f32 %v570, %v588
        %v591 = vmul.f32 %v571, %v588
        %594 = vrot.lane.b32.xlu0 %v590, 124
        %v595 = vpop.permute.xlu0 %594
        %596 = vrot.lane.b32.xlu0 %v591, 124
        %v597 = vpop.permute.xlu0 %596
        %v600 = vadd.f32 %v579, %v595
        %v601 = vadd.f32 %v580, %v597
        %v602 = vld [vmem:[%s2 + $0x5] sm:$0x1]
        %v603 = vlaneseq
        %v604 = vshrl.u32 %v603, 7
        %v605 = vsub.s32 0, %v604
        %v606 = vrot.slane %v602, %v605
        %608 = vrot.lane.b32.xlu0 %v606, 8
        %v609 = vpop.permute.xlu0 %608
        %v611 = vmul.f32 %v570, %v609
        %v612 = vmul.f32 %v571, %v609
        %615 = vrot.lane.b32.xlu0 %v611, 120
        %v616 = vpop.permute.xlu0 %615
        %617 = vrot.lane.b32.xlu0 %v612, 120
        %v618 = vpop.permute.xlu0 %617
        %v621 = vadd.f32 %v600, %v616
        %v622 = vadd.f32 %v601, %v618
        %v623 = vld [vmem:[#allocation2 + $0x2] sm:$0xff]
        %v624 = vld [vmem:[#allocation2 + $0xa] sm:$0xff]
        %v625 = vld [vmem:[%s2 + $0x6] sm:$0x1]
        %v626 = vlaneseq
        %v627 = vshrl.u32 %v626, 7
        %v628 = vsub.s32 0, %v627
        %v629 = vrot.slane %v625, %v628
        %v630 = vmul.f32 %v623, %v629
        %v631 = vmul.f32 %v624, %v629
        %v632 = vadd.f32 %v621, %v630
        %v633 = vadd.f32 %v622, %v631
        %v634 = vld [vmem:[%s2 + $0x7] sm:$0x1]
        %v635 = vlaneseq
        %v636 = vshrl.u32 %v635, 7
        %v637 = vsub.s32 0, %v636
        %v638 = vrot.slane %v634, %v637
        %640 = vrot.lane.b32.xlu0 %v638, 4
        %v641 = vpop.permute.xlu0 %640
        %v643 = vmul.f32 %v623, %v641
        %v644 = vmul.f32 %v624, %v641
        %647 = vrot.lane.b32.xlu0 %v643, 124
        %v648 = vpop.permute.xlu0 %647
        %649 = vrot.lane.b32.xlu0 %v644, 124
        %v650 = vpop.permute.xlu0 %649
        %v653 = vadd.f32 %v632, %v648
        %v654 = vadd.f32 %v633, %v650
        %v655 = vld [vmem:[%s2 + $0x8] sm:$0x1]
        %v656 = vlaneseq
        %v657 = vshrl.u32 %v656, 7
        %v658 = vsub.s32 0, %v657
        %v659 = vrot.slane %v655, %v658
        %661 = vrot.lane.b32.xlu0 %v659, 8
        %v662 = vpop.permute.xlu0 %661
        %v664 = vmul.f32 %v623, %v662
        %v665 = vmul.f32 %v624, %v662
        %668 = vrot.lane.b32.xlu0 %v664, 120
        %v669 = vpop.permute.xlu0 %668
        %670 = vrot.lane.b32.xlu0 %v665, 120
        %v671 = vpop.permute.xlu0 %670
        %v674 = vadd.f32 %v653, %v669
        %v675 = vadd.f32 %v654, %v671
        %v676 = vld [vmem:[%s428] sm:$0x1]
        %v678 = vlaneseq
        %v679 = vshrl.u32 %v678, 7
        %v680 = vsub.s32 0, %v679
        %v681 = vrot.slane %v676, %v680
        %v683 = vmul.f32 %v674, %v681
        %v684 = vmul.f32 %v675, %v681
        %v685 = vpack.c.bf16 %v684, %v683
        %v686 = vld [vmem:[#allocation7] sm:$0xff]
        %v687 = vld [vmem:[#allocation7 + $0x8] sm:$0xff]
        %v688 = vld [vmem:[#allocation7 + $0x10] sm:$0xff]
        %v689 = vld [vmem:[#allocation7 + $0x18] sm:$0xff]
        %v690 = vld [vmem:[#allocation7 + $0x20] sm:$0xff]
        %v691 = vld [vmem:[#allocation7 + $0x28] sm:$0xff]
        %v692 = vld [vmem:[#allocation7 + $0x30] sm:$0xff]
        %v693 = vld [vmem:[#allocation7 + $0x38] sm:$0xff]
        %v694 = vld [vmem:[%s4] sm:$0x3]
        %v696 = vlaneseq
        %v697 = vshrl.u32 %v696, 7
        %v698 = vsub.s32 0, %v697
        %v699 = vrot.slane %v694, %v698
        %v700 = vlaneseq
        %v701 = vshrl.u32 %v700, 7
        %v702 = vsub.s32 1, %v701
        %v703 = vrot.slane %v694, %v702
        %v714 = vunpack.c.l.b16 %v686
        %v715 = vunpack.c.h.b16 %v686
        %v716 = vunpack.c.l.b16 %v687
        %v717 = vunpack.c.h.b16 %v687
        %v718 = vunpack.c.l.b16 %v688
        %v719 = vunpack.c.h.b16 %v688
        %v720 = vunpack.c.l.b16 %v689
        %v721 = vunpack.c.h.b16 %v689
        %v722 = vunpack.c.l.b16 %v690
        %v723 = vunpack.c.h.b16 %v690
        %v724 = vunpack.c.l.b16 %v691
        %v725 = vunpack.c.h.b16 %v691
        %v726 = vunpack.c.l.b16 %v692
        %v727 = vunpack.c.h.b16 %v692
        %v728 = vunpack.c.l.b16 %v693
        %v729 = vunpack.c.h.b16 %v693
        %v730 = vpack.c.b16 %v716, %v714
        %v731 = vpack.c.b16 %v717, %v715
        %v732 = vpack.c.b16 %v720, %v718
        %v733 = vpack.c.b16 %v721, %v719
        %v734 = vpack.c.b16 %v724, %v722
        %v735 = vpack.c.b16 %v725, %v723
        %v736 = vpack.c.b16 %v728, %v726
        %v737 = vpack.c.b16 %v729, %v727
        %vm746 = vcmask 523264
        %v748 = vsel %vm746, %v685, 0
        %750 = vmatprep.subr.bf16.mxu0 0
        %751 = vmatpush1.bf16.msra.mxu0 0
        %752 = vmatprep.subr.bf16.mxu0 0
        %753 = vmatpush1.bf16.msra.mxu0 0
        %754 = vmatprep.subr.bf16.mxu0 0
        %755 = vmatpush1.bf16.msra.mxu0 0
        %756 = vmatprep.subr.bf16.mxu0 0
        %757 = vmatpush1.bf16.msra.mxu0 0
        %758 = vmatprep.subr.bf16.mxu0 %v737
        %759 = vmatpush1.bf16.msra.mxu0 %v736
        %760 = vmatprep.subr.bf16.mxu0 %v735
        %761 = vmatpush1.bf16.msra.mxu0 %v734
        %762 = vmatprep.subr.bf16.mxu0 %v733
        %763 = vmatpush1.bf16.msra.mxu0 %v732
        %764 = vmatprep.subr.bf16.mxu0 %v731
        %765 = vmatpush1.bf16.msra.mxu0 %v730
        %766 = vmatprep.subr.bf16.mxu0 0
        %767 = vmatpush2.bf16.msra.mxu0 0
        %768 = vmatprep.subr.bf16.mxu0 0
        %769 = vmatpush2.bf16.msra.mxu0 0
        %770 = vmatprep.subr.bf16.mxu0 0
        %771 = vmatpush2.bf16.msra.mxu0 0
        %772 = vmatprep.subr.bf16.mxu0 0
        %773 = vmatpush2.bf16.msra.mxu0 0
        %774 = vmatprep.subr.bf16.mxu0 0
        %775 = vmatpush2.bf16.msra.mxu0 0
        %776 = vmatprep.subr.bf16.mxu0 0
        %777 = vmatpush2.bf16.msra.mxu0 0
        %778 = vmatprep.subr.bf16.mxu0 0
        %779 = vmatpush2.bf16.msra.mxu0 0
        %780 = vmatprep.subr.bf16.mxu0 0
        %781 = vmatpush2.bf16.msra.mxu0 0
        %782 = vmatprep.mubr.bf16.mxu0 0
        %783 = vmatmul.mubr.bf16.gmra.mxu0 %v748
        %v784 = vpop.f32.mrf.mxu0
        %v785 = vadd.f32 %v699, %v784
        %v786 = vpop.f32.mrf.mxu0
        %v787 = vadd.f32 %v703, %v786
        %v788 = vpop.f32.mrf.mxu0
        %v789 = vadd.f32 %v699, %v788
        %v790 = vpop.f32.mrf.mxu0
        %v791 = vadd.f32 %v703, %v790
        %792 = vdwg.mxu0
        %v793 = vxor.u32 %v785, 2147483648
        %v794 = vxor.u32 %v787, 2147483648
        %v795 = vxor.u32 %v789, 2147483648
        %v796 = vxor.u32 %v791, 2147483648
        %v797 = vmul.f32 %v793, 1.442695
        %v798 = vpow.pop %v797
        %v799 = vmul.f32 %v794, 1.442695
        %v800 = vpow.pop %v799
        %v801 = vmul.f32 %v795, 1.442695
        %v802 = vpow.pop %v801
        %v803 = vmul.f32 %v796, 1.442695
        %v804 = vpow.pop %v803
        %v805 = vadd.f32 %v798, 1.0
        %v806 = vadd.f32 %v800, 1.0
        %v807 = vadd.f32 %v802, 1.0
        %v808 = vadd.f32 %v804, 1.0
        %v809 = vrcp.pop %v805
        %v810 = vmul.f32 1.0, %v809
        %v811 = vrcp.pop %v806
        %v812 = vmul.f32 1.0, %v811
        %v813 = vrcp.pop %v807
        %v814 = vmul.f32 1.0, %v813
        %v815 = vrcp.pop %v808
        %v816 = vmul.f32 1.0, %v815
        %v817 = vmul.f32 %v785, %v810
        %v818 = vmul.f32 %v787, %v812
        %v819 = vmul.f32 %v789, %v814
        %v820 = vmul.f32 %v791, %v816
        %v821 = vpack.c.bf16 %v819, %v817
        %v822 = vpack.c.bf16 %v820, %v818
        %v823 = vld [vmem:[#allocation9] sm:$0xf]
        %v824 = vld [vmem:[#allocation9 + $0x4] sm:$0xf]
        %v825 = vld [vmem:[#allocation9 + $0x8] sm:$0xf]
        %v826 = vld [vmem:[#allocation9 + $0xc] sm:$0xf]
        %v827 = vld [vmem:[#allocation9 + $0x10] sm:$0xf]
        %v828 = vld [vmem:[#allocation9 + $0x14] sm:$0xf]
        %v829 = vld [vmem:[#allocation9 + $0x18] sm:$0xf]
        %v830 = vld [vmem:[#allocation9 + $0x1c] sm:$0xf]
        %v831 = vld [vmem:[#allocation9 + $0x20] sm:$0xf]
        %v832 = vld [vmem:[#allocation9 + $0x24] sm:$0xf]
        %v833 = vld [vmem:[#allocation9 + $0x28] sm:$0xf]
        %v834 = vld [vmem:[#allocation9 + $0x2c] sm:$0xf]
        %v835 = vld [vmem:[#allocation9 + $0x30] sm:$0xf]
        %v836 = vld [vmem:[#allocation9 + $0x34] sm:$0xf]
        %v837 = vld [vmem:[#allocation9 + $0x38] sm:$0xf]
        %v838 = vld [vmem:[#allocation9 + $0x3c] sm:$0xf]
        %v839 = vld [vmem:[#allocation9 + $0x40] sm:$0xf]
        %v840 = vld [vmem:[#allocation9 + $0x44] sm:$0xf]
        %v841 = vld [vmem:[#allocation9 + $0x48] sm:$0xf]
        %v842 = vld [vmem:[#allocation9 + $0x4c] sm:$0xf]
        %v843 = vld [vmem:[#allocation9 + $0x50] sm:$0xf]
        %v844 = vld [vmem:[#allocation9 + $0x54] sm:$0xf]
        %v845 = vld [vmem:[#allocation9 + $0x58] sm:$0xf]
        %v846 = vld [vmem:[#allocation9 + $0x5c] sm:$0xf]
        %v847 = vld [vmem:[#allocation9 + $0x60] sm:$0xf]
        %v848 = vld [vmem:[#allocation9 + $0x64] sm:$0xf]
        %v849 = vld [vmem:[#allocation9 + $0x68] sm:$0xf]
        %v850 = vld [vmem:[#allocation9 + $0x6c] sm:$0xf]
        %v851 = vld [vmem:[#allocation9 + $0x70] sm:$0xf]
        %v852 = vld [vmem:[#allocation9 + $0x74] sm:$0xf]
        %v853 = vld [vmem:[#allocation9 + $0x78] sm:$0xf]
        %v854 = vld [vmem:[#allocation9 + $0x7c] sm:$0xf]
        %v855 = vld [vmem:[%s6] sm:$0x1]
        %v857 = vlaneseq
        %v858 = vshrl.u32 %v857, 7
        %v859 = vsub.s32 0, %v858
        %v860 = vrot.slane %v855, %v859
        %v894 = vunpack.c.l.b16 %v823
        %v895 = vunpack.c.l.b16 %v824
        %v896 = vunpack.c.l.b16 %v825
        %v897 = vunpack.c.l.b16 %v826
        %v898 = vunpack.c.l.b16 %v827
        %v899 = vunpack.c.l.b16 %v828
        %v900 = vunpack.c.l.b16 %v829
        %v901 = vunpack.c.l.b16 %v830
        %v902 = vunpack.c.l.b16 %v831
        %v903 = vunpack.c.l.b16 %v832
        %v904 = vunpack.c.l.b16 %v833
        %v905 = vunpack.c.l.b16 %v834
        %v906 = vunpack.c.l.b16 %v835
        %v907 = vunpack.c.l.b16 %v836
        %v908 = vunpack.c.l.b16 %v837
        %v909 = vunpack.c.l.b16 %v838
        %v910 = vunpack.c.l.b16 %v839
        %v911 = vunpack.c.l.b16 %v840
        %v912 = vunpack.c.l.b16 %v841
        %v913 = vunpack.c.l.b16 %v842
        %v914 = vunpack.c.l.b16 %v843
        %v915 = vunpack.c.l.b16 %v844
        %v916 = vunpack.c.l.b16 %v845
        %v917 = vunpack.c.l.b16 %v846
        %v918 = vunpack.c.l.b16 %v847
        %v919 = vunpack.c.l.b16 %v848
        %v920 = vunpack.c.l.b16 %v849
        %v921 = vunpack.c.l.b16 %v850
        %v922 = vunpack.c.l.b16 %v851
        %v923 = vunpack.c.l.b16 %v852
        %v924 = vunpack.c.l.b16 %v853
        %v925 = vunpack.c.l.b16 %v854
        %v926 = vpack.c.b16 %v895, %v894
        %v927 = vpack.c.b16 %v897, %v896
        %v928 = vpack.c.b16 %v899, %v898
        %v929 = vpack.c.b16 %v901, %v900
        %v930 = vpack.c.b16 %v903, %v902
        %v931 = vpack.c.b16 %v905, %v904
        %v932 = vpack.c.b16 %v907, %v906
        %v933 = vpack.c.b16 %v909, %v908
        %v934 = vpack.c.b16 %v911, %v910
        %v935 = vpack.c.b16 %v913, %v912
        %v936 = vpack.c.b16 %v915, %v914
        %v937 = vpack.c.b16 %v917, %v916
        %v938 = vpack.c.b16 %v919, %v918
        %v939 = vpack.c.b16 %v921, %v920
        %v940 = vpack.c.b16 %v923, %v922
        %v941 = vpack.c.b16 %v925, %v924
        %958 = vmatprep.subr.bf16.mxu0 0
        %959 = vmatpush1.bf16.msra.mxu0 %v933
        %960 = vmatprep.subr.bf16.mxu0 0
        %961 = vmatpush1.bf16.msra.mxu0 %v932
        %962 = vmatprep.subr.bf16.mxu0 0
        %963 = vmatpush1.bf16.msra.mxu0 %v931
        %964 = vmatprep.subr.bf16.mxu0 0
        %965 = vmatpush1.bf16.msra.mxu0 %v930
        %966 = vmatprep.subr.bf16.mxu0 0
        %967 = vmatpush1.bf16.msra.mxu0 %v929
        %968 = vmatprep.subr.bf16.mxu0 0
        %969 = vmatpush1.bf16.msra.mxu0 %v928
        %970 = vmatprep.subr.bf16.mxu0 0
        %971 = vmatpush1.bf16.msra.mxu0 %v927
        %972 = vmatprep.subr.bf16.mxu0 0
        %973 = vmatpush1.bf16.msra.mxu0 %v926
        %974 = vmatprep.subr.bf16.mxu0 0
        %975 = vmatpush2.bf16.msra.mxu0 %v941
        %976 = vmatprep.subr.bf16.mxu0 0
        %977 = vmatpush2.bf16.msra.mxu0 %v940
        %978 = vmatprep.subr.bf16.mxu0 0
        %979 = vmatpush2.bf16.msra.mxu0 %v939
        %980 = vmatprep.subr.bf16.mxu0 0
        %981 = vmatpush2.bf16.msra.mxu0 %v938
        %982 = vmatprep.subr.bf16.mxu0 0
        %983 = vmatpush2.bf16.msra.mxu0 %v937
        %984 = vmatprep.subr.bf16.mxu0 0
        %985 = vmatpush2.bf16.msra.mxu0 %v936
        %986 = vmatprep.subr.bf16.mxu0 0
        %987 = vmatpush2.bf16.msra.mxu0 %v935
        %988 = vmatprep.subr.bf16.mxu0 0
        %989 = vmatpush2.bf16.msra.mxu0 %v934
        %990 = vmatprep.mubr.bf16.mxu0 %v822
        %991 = vmatmul.mubr.bf16.gmra.mxu0 %v821
        %v992 = vpop.f32.mrf.mxu0
        %v993 = vadd.f32 %v860, %v992
        %v994 = vpop.f32.mrf.mxu0
        %v995 = vpop.f32.mrf.mxu0
        %v996 = vadd.f32 %v860, %v995
        %v997 = vpop.f32.mrf.mxu0
        %998 = vdwg.mxu0
        %v999 = vld [vmem:[%s7] sm:$0xff]
        %v1000 = vld [vmem:[%s7 + $0x8] sm:$0xff]
        %v1001 = vld [vmem:[%s7 + $0x10] sm:$0xff]
        %v1002 = vld [vmem:[%s7 + $0x18] sm:$0xff]
        %vm1003 = vcmask 130048
        %v1005 = vsel %vm1003, %v999, 0
        %v1008 = vsel %vm1003, %v1000, 0
        %v1011 = vsel %vm1003, %v1001, 0
        %v1014 = vsel %vm1003, %v1002, 0
        %1016 = vmatprep.subr.mxu0 0.0
        %1017 = vmatpush1.msra.mxu0 0.0
        %1018 = vmatprep.subr.mxu0 0.0
        %1019 = vmatpush1.msra.mxu0 0.0
        %1020 = vmatprep.subr.mxu0 0.0
        %1021 = vmatpush1.msra.mxu0 0.0
        %1022 = vmatprep.subr.mxu0 0.0
        %1023 = vmatpush1.msra.mxu0 0.0
        %1024 = vmatprep.subr.mxu0 0.0
        %1025 = vmatpush1.msra.mxu0 0.0
        %1026 = vmatprep.subr.mxu0 0.0
        %1027 = vmatpush1.msra.mxu0 0.0
        %1028 = vmatprep.subr.mxu0 0.0
        %1029 = vmatpush1.msra.mxu0 0.0
        %1030 = vmatprep.subr.mxu0 0.0
        %1031 = vmatpush1.msra.mxu0 0.0
        %1032 = vmatprep.subr.mxu0 0.0
        %1033 = vmatpush1.msra.mxu0 0.0
        %1034 = vmatprep.subr.mxu0 0.0
        %1035 = vmatpush1.msra.mxu0 0.0
        %1036 = vmatprep.subr.mxu0 0.0
        %1037 = vmatpush1.msra.mxu0 0.0
        %1038 = vmatprep.subr.mxu0 0.0
        %1039 = vmatpush1.msra.mxu0 0.0
        %1040 = vmatprep.subr.mxu0 0.0
        %1041 = vmatpush1.msra.mxu0 0.0
        %1042 = vmatprep.subr.mxu0 0.0
        %1043 = vmatpush1.msra.mxu0 0.0
        %1044 = vmatprep.subr.mxu0 0.0
        %1045 = vmatpush1.msra.mxu0 %v996
        %1046 = vmatprep.subr.mxu0 0.0
        %1047 = vmatpush1.msra.mxu0 %v993
        %1048 = vmatprep.subr.mxu0 0.0
        %1049 = vmatpush2.msra.mxu0 0.0
        %1050 = vmatprep.subr.mxu0 0.0
        %1051 = vmatpush2.msra.mxu0 0.0
        %1052 = vmatprep.subr.mxu0 0.0
        %1053 = vmatpush2.msra.mxu0 0.0
        %1054 = vmatprep.subr.mxu0 0.0
        %1055 = vmatpush2.msra.mxu0 0.0
        %1056 = vmatprep.subr.mxu0 0.0
        %1057 = vmatpush2.msra.mxu0 0.0
        %1058 = vmatprep.subr.mxu0 0.0
        %1059 = vmatpush2.msra.mxu0 0.0
        %1060 = vmatprep.subr.mxu0 0.0
        %1061 = vmatpush2.msra.mxu0 0.0
        %1062 = vmatprep.subr.mxu0 0.0
        %1063 = vmatpush2.msra.mxu0 0.0
        %1064 = vmatprep.subr.mxu0 0.0
        %1065 = vmatpush2.msra.mxu0 0.0
        %1066 = vmatprep.subr.mxu0 0.0
        %1067 = vmatpush2.msra.mxu0 0.0
        %1068 = vmatprep.subr.mxu0 0.0
        %1069 = vmatpush2.msra.mxu0 0.0
        %1070 = vmatprep.subr.mxu0 0.0
        %1071 = vmatpush2.msra.mxu0 0.0
        %1072 = vmatprep.subr.mxu0 0.0
        %1073 = vmatpush2.msra.mxu0 0.0
        %1074 = vmatprep.subr.mxu0 0.0
        %1075 = vmatpush2.msra.mxu0 0.0
        %1076 = vmatprep.subr.mxu0 0.0
        %1077 = vmatpush2.msra.mxu0 0.0
        %1078 = vmatprep.subr.mxu0 0.0
        %1079 = vmatpush2.msra.mxu0 0.0
        %1080 = vmatprep.mubr.f32.mxu0 0.0
        %1081 = vmatmul.mubr.f32.gmra.mxu0 %v1005
        %v1082 = vpop.f32.mrf.mxu0
        %v1083 = vadd.f32 0.0, %v1082
        %v1084 = vpop.f32.mrf.mxu0
        %1085 = vmatprep.mubr.f32.mxu0 0.0
        %1086 = vmatmul.mubr.f32.gmra.mxu0 %v1008
        %v1087 = vpop.f32.mrf.mxu0
        %v1088 = vadd.f32 0.0, %v1087
        %v1089 = vpop.f32.mrf.mxu0
        %1090 = vmatprep.mubr.f32.mxu0 0.0
        %1091 = vmatmul.mubr.f32.gmra.mxu0 %v1011
        %v1092 = vpop.f32.mrf.mxu0
        %v1093 = vadd.f32 0.0, %v1092
        %v1094 = vpop.f32.mrf.mxu0
        %1095 = vmatprep.mubr.f32.mxu0 0.0
        %1096 = vmatmul.mubr.f32.gmra.mxu0 %v1014
        %v1097 = vpop.f32.mrf.mxu0
        %v1098 = vadd.f32 0.0, %v1097
        %v1099 = vpop.f32.mrf.mxu0
        %1100 = vdwg.mxu0
        %1101 = vst [vmem:[#allocation3] sm:$0x1] 0.0
        %1102 = vst [vmem:[#allocation3 + $0x21] sm:$0x1] 0.0
        %1103 = vst [vmem:[#allocation3 + $0x1] sm:$0xff] %v1083
        %1104 = vst [vmem:[#allocation3 + $0x9] sm:$0xff] %v1088
        %1105 = vst [vmem:[#allocation3 + $0x11] sm:$0xff] %v1093
        %1106 = vst [vmem:[#allocation3 + $0x19] sm:$0xff] %v1098
        %v1107 = vld [vmem:[#allocation3] sm:$0xff]
        %v1108 = vld [vmem:[#allocation3 + $0x8] sm:$0xff]
        %v1109 = vld [vmem:[#allocation3 + $0x10] sm:$0xff]
        %v1110 = vld [vmem:[#allocation3 + $0x18] sm:$0xff]
        %v1111 = vpack.c.bf16 %v1108, %v1107
        %v1112 = vpack.c.bf16 %v1110, %v1109
        %v1113 = vld [vmem:[#allocation10] sm:$0xff]
        %v1114 = vld [vmem:[#allocation10 + $0x8] sm:$0xff]
        %v1115 = vld [vmem:[#allocation10 + $0x10] sm:$0xff]
        %v1116 = vld [vmem:[#allocation10 + $0x18] sm:$0xff]
        %v1117 = vld [vmem:[#allocation10 + $0x20] sm:$0xff]
        %v1118 = vld [vmem:[#allocation10 + $0x28] sm:$0xff]
        %v1119 = vld [vmem:[#allocation10 + $0x30] sm:$0xff]
        %v1120 = vld [vmem:[#allocation10 + $0x38] sm:$0xff]
        %v1121 = vld [vmem:[#allocation10 + $0x40] sm:$0xff]
        %v1122 = vld [vmem:[#allocation10 + $0x48] sm:$0xff]
        %v1123 = vld [vmem:[#allocation10 + $0x50] sm:$0xff]
        %v1124 = vld [vmem:[#allocation10 + $0x58] sm:$0xff]
        %v1125 = vld [vmem:[#allocation10 + $0x60] sm:$0xff]
        %v1126 = vld [vmem:[#allocation10 + $0x68] sm:$0xff]
        %v1127 = vld [vmem:[#allocation10 + $0x70] sm:$0xff]
        %v1128 = vld [vmem:[#allocation10 + $0x78] sm:$0xff]
        %v1129 = vld [vmem:[#allocation3 + $0x1] sm:$0xff]
        %v1130 = vld [vmem:[#allocation3 + $0x9] sm:$0xff]
        %v1131 = vld [vmem:[#allocation3 + $0x11] sm:$0xff]
        %v1132 = vld [vmem:[#allocation3 + $0x19] sm:$0xff]
        %v1133 = vpack.c.bf16 %v1130, %v1129
        %v1134 = vpack.c.bf16 %v1132, %v1131
        %s1135 = scalar_lea.vmem [#allocation10], 128
        %v1136 = vld [vmem:[%s1135] sm:$0xff]
        %v1137 = vld [vmem:[%s1135 + $0x8] sm:$0xff]
        %v1138 = vld [vmem:[%s1135 + $0x10] sm:$0xff]
        %v1139 = vld [vmem:[%s1135 + $0x18] sm:$0xff]
        %v1140 = vld [vmem:[%s1135 + $0x20] sm:$0xff]
        %v1141 = vld [vmem:[%s1135 + $0x28] sm:$0xff]
        %v1142 = vld [vmem:[%s1135 + $0x30] sm:$0xff]
        %v1143 = vld [vmem:[%s1135 + $0x38] sm:$0xff]
        %v1144 = vld [vmem:[%s1135 + $0x40] sm:$0xff]
        %v1145 = vld [vmem:[%s1135 + $0x48] sm:$0xff]
        %v1146 = vld [vmem:[%s1135 + $0x50] sm:$0xff]
        %v1147 = vld [vmem:[%s1135 + $0x58] sm:$0xff]
        %v1148 = vld [vmem:[%s1135 + $0x60] sm:$0xff]
        %v1149 = vld [vmem:[%s1135 + $0x68] sm:$0xff]
        %v1150 = vld [vmem:[%s1135 + $0x70] sm:$0xff]
        %v1151 = vld [vmem:[%s1135 + $0x78] sm:$0xff]
        %v1168 = vunpack.c.l.b16 %v1136
        %v1169 = vunpack.c.h.b16 %v1136
        %v1170 = vunpack.c.l.b16 %v1137
        %v1171 = vunpack.c.h.b16 %v1137
        %v1172 = vunpack.c.l.b16 %v1138
        %v1173 = vunpack.c.h.b16 %v1138
        %v1174 = vunpack.c.l.b16 %v1139
        %v1175 = vunpack.c.h.b16 %v1139
        %v1176 = vunpack.c.l.b16 %v1140
        %v1177 = vunpack.c.h.b16 %v1140
        %v1178 = vunpack.c.l.b16 %v1141
        %v1179 = vunpack.c.h.b16 %v1141
        %v1180 = vunpack.c.l.b16 %v1142
        %v1181 = vunpack.c.h.b16 %v1142
        %v1182 = vunpack.c.l.b16 %v1143
        %v1183 = vunpack.c.h.b16 %v1143
        %v1184 = vunpack.c.l.b16 %v1144
        %v1185 = vunpack.c.h.b16 %v1144
        %v1186 = vunpack.c.l.b16 %v1145
        %v1187 = vunpack.c.h.b16 %v1145
        %v1188 = vunpack.c.l.b16 %v1146
        %v1189 = vunpack.c.h.b16 %v1146
        %v1190 = vunpack.c.l.b16 %v1147
        %v1191 = vunpack.c.h.b16 %v1147
        %v1192 = vunpack.c.l.b16 %v1148
        %v1193 = vunpack.c.h.b16 %v1148
        %v1194 = vunpack.c.l.b16 %v1149
        %v1195 = vunpack.c.h.b16 %v1149
        %v1196 = vunpack.c.l.b16 %v1150
        %v1197 = vunpack.c.h.b16 %v1150
        %v1198 = vunpack.c.l.b16 %v1151
        %v1199 = vunpack.c.h.b16 %v1151
        %v1200 = vpack.c.b16 %v1170, %v1168
        %v1201 = vpack.c.b16 %v1171, %v1169
        %v1202 = vpack.c.b16 %v1174, %v1172
        %v1203 = vpack.c.b16 %v1175, %v1173
        %v1204 = vpack.c.b16 %v1178, %v1176
        %v1205 = vpack.c.b16 %v1179, %v1177
        %v1206 = vpack.c.b16 %v1182, %v1180
        %v1207 = vpack.c.b16 %v1183, %v1181
        %v1208 = vpack.c.b16 %v1186, %v1184
        %v1209 = vpack.c.b16 %v1187, %v1185
        %v1210 = vpack.c.b16 %v1190, %v1188
        %v1211 = vpack.c.b16 %v1191, %v1189
        %v1212 = vpack.c.b16 %v1194, %v1192
        %v1213 = vpack.c.b16 %v1195, %v1193
        %v1214 = vpack.c.b16 %v1198, %v1196
        %v1215 = vpack.c.b16 %v1199, %v1197
        %1232 = vmatprep.subr.bf16.mxu0 %v1215
        %1233 = vmatpush1.bf16.msra.mxu0 %v1214
        %1234 = vmatprep.subr.bf16.mxu0 %v1213
        %1235 = vmatpush1.bf16.msra.mxu0 %v1212
        %1236 = vmatprep.subr.bf16.mxu0 %v1211
        %1237 = vmatpush1.bf16.msra.mxu0 %v1210
        %1238 = vmatprep.subr.bf16.mxu0 %v1209
        %1239 = vmatpush1.bf16.msra.mxu0 %v1208
        %1240 = vmatprep.subr.bf16.mxu0 %v1207
        %1241 = vmatpush1.bf16.msra.mxu0 %v1206
        %1242 = vmatprep.subr.bf16.mxu0 %v1205
        %1243 = vmatpush1.bf16.msra.mxu0 %v1204
        %1244 = vmatprep.subr.bf16.mxu0 %v1203
        %1245 = vmatpush1.bf16.msra.mxu0 %v1202
        %1246 = vmatprep.subr.bf16.mxu0 %v1201
        %1247 = vmatpush1.bf16.msra.mxu0 %v1200
        %1248 = vmatprep.subr.bf16.mxu0 0
        %1249 = vmatpush2.bf16.msra.mxu0 0
        %1250 = vmatprep.subr.bf16.mxu0 0
        %1251 = vmatpush2.bf16.msra.mxu0 0
        %1252 = vmatprep.subr.bf16.mxu0 0
        %1253 = vmatpush2.bf16.msra.mxu0 0
        %1254 = vmatprep.subr.bf16.mxu0 0
        %1255 = vmatpush2.bf16.msra.mxu0 0
        %1256 = vmatprep.subr.bf16.mxu0 0
        %1257 = vmatpush2.bf16.msra.mxu0 0
        %1258 = vmatprep.subr.bf16.mxu0 0
        %1259 = vmatpush2.bf16.msra.mxu0 0
        %1260 = vmatprep.subr.bf16.mxu0 0
        %1261 = vmatpush2.bf16.msra.mxu0 0
        %1262 = vmatprep.subr.bf16.mxu0 0
        %1263 = vmatpush2.bf16.msra.mxu0 0
        %1264 = vmatprep.mubr.bf16.mxu0 0
        %1265 = vmatmul.mubr.bf16.gmra.mxu0 %v1133
        %v1266 = vpop.f32.mrf.mxu0
        %v1267 = vadd.f32 0.0, %v1266
        %v1268 = vpop.f32.mrf.mxu0
        %v1269 = vadd.f32 0.0, %v1268
        %v1270 = vpop.f32.mrf.mxu0
        %v1271 = vadd.f32 0.0, %v1270
        %v1272 = vpop.f32.mrf.mxu0
        %v1273 = vadd.f32 0.0, %v1272
        %1274 = vmatprep.mubr.bf16.mxu0 0
        %1275 = vmatmul.mubr.bf16.gmra.mxu0 %v1134
        %v1276 = vpop.f32.mrf.mxu0
        %v1277 = vadd.f32 0.0, %v1276
        %v1278 = vpop.f32.mrf.mxu0
        %v1279 = vadd.f32 0.0, %v1278
        %v1280 = vpop.f32.mrf.mxu0
        %v1281 = vadd.f32 0.0, %v1280
        %v1282 = vpop.f32.mrf.mxu0
        %v1283 = vadd.f32 0.0, %v1282
        %1284 = vdwg.mxu0
        %v1301 = vunpack.c.l.b16 %v1113
        %v1302 = vunpack.c.h.b16 %v1113
        %v1303 = vunpack.c.l.b16 %v1114
        %v1304 = vunpack.c.h.b16 %v1114
        %v1305 = vunpack.c.l.b16 %v1115
        %v1306 = vunpack.c.h.b16 %v1115
        %v1307 = vunpack.c.l.b16 %v1116
        %v1308 = vunpack.c.h.b16 %v1116
        %v1309 = vunpack.c.l.b16 %v1117
        %v1310 = vunpack.c.h.b16 %v1117
        %v1311 = vunpack.c.l.b16 %v1118
        %v1312 = vunpack.c.h.b16 %v1118
        %v1313 = vunpack.c.l.b16 %v1119
        %v1314 = vunpack.c.h.b16 %v1119
        %v1315 = vunpack.c.l.b16 %v1120
        %v1316 = vunpack.c.h.b16 %v1120
        %v1317 = vunpack.c.l.b16 %v1121
        %v1318 = vunpack.c.h.b16 %v1121
        %v1319 = vunpack.c.l.b16 %v1122
        %v1320 = vunpack.c.h.b16 %v1122
        %v1321 = vunpack.c.l.b16 %v1123
        %v1322 = vunpack.c.h.b16 %v1123
        %v1323 = vunpack.c.l.b16 %v1124
        %v1324 = vunpack.c.h.b16 %v1124
        %v1325 = vunpack.c.l.b16 %v1125
        %v1326 = vunpack.c.h.b16 %v1125
        %v1327 = vunpack.c.l.b16 %v1126
        %v1328 = vunpack.c.h.b16 %v1126
        %v1329 = vunpack.c.l.b16 %v1127
        %v1330 = vunpack.c.h.b16 %v1127
        %v1331 = vunpack.c.l.b16 %v1128
        %v1332 = vunpack.c.h.b16 %v1128
        %v1333 = vpack.c.b16 %v1303, %v1301
        %v1334 = vpack.c.b16 %v1304, %v1302
        %v1335 = vpack.c.b16 %v1307, %v1305
        %v1336 = vpack.c.b16 %v1308, %v1306
        %v1337 = vpack.c.b16 %v1311, %v1309
        %v1338 = vpack.c.b16 %v1312, %v1310
        %v1339 = vpack.c.b16 %v1315, %v1313
        %v1340 = vpack.c.b16 %v1316, %v1314
        %v1341 = vpack.c.b16 %v1319, %v1317
        %v1342 = vpack.c.b16 %v1320, %v1318
        %v1343 = vpack.c.b16 %v1323, %v1321
        %v1344 = vpack.c.b16 %v1324, %v1322
        %v1345 = vpack.c.b16 %v1327, %v1325
        %v1346 = vpack.c.b16 %v1328, %v1326
        %v1347 = vpack.c.b16 %v1331, %v1329
        %v1348 = vpack.c.b16 %v1332, %v1330
        %1365 = vmatprep.subr.bf16.mxu0 %v1348
        %1366 = vmatpush1.bf16.msra.mxu0 %v1347
        %1367 = vmatprep.subr.bf16.mxu0 %v1346
        %1368 = vmatpush1.bf16.msra.mxu0 %v1345
        %1369 = vmatprep.subr.bf16.mxu0 %v1344
        %1370 = vmatpush1.bf16.msra.mxu0 %v1343
        %1371 = vmatprep.subr.bf16.mxu0 %v1342
        %1372 = vmatpush1.bf16.msra.mxu0 %v1341
        %1373 = vmatprep.subr.bf16.mxu0 %v1340
        %1374 = vmatpush1.bf16.msra.mxu0 %v1339
        %1375 = vmatprep.subr.bf16.mxu0 %v1338
        %1376 = vmatpush1.bf16.msra.mxu0 %v1337
        %1377 = vmatprep.subr.bf16.mxu0 %v1336
        %1378 = vmatpush1.bf16.msra.mxu0 %v1335
        %1379 = vmatprep.subr.bf16.mxu0 %v1334
        %1380 = vmatpush1.bf16.msra.mxu0 %v1333
        %1381 = vmatprep.subr.bf16.mxu0 0
        %1382 = vmatpush2.bf16.msra.mxu0 0
        %1383 = vmatprep.subr.bf16.mxu0 0
        %1384 = vmatpush2.bf16.msra.mxu0 0
        %1385 = vmatprep.subr.bf16.mxu0 0
        %1386 = vmatpush2.bf16.msra.mxu0 0
        %1387 = vmatprep.subr.bf16.mxu0 0
        %1388 = vmatpush2.bf16.msra.mxu0 0
        %1389 = vmatprep.subr.bf16.mxu0 0
        %1390 = vmatpush2.bf16.msra.mxu0 0
        %1391 = vmatprep.subr.bf16.mxu0 0
        %1392 = vmatpush2.bf16.msra.mxu0 0
        %1393 = vmatprep.subr.bf16.mxu0 0
        %1394 = vmatpush2.bf16.msra.mxu0 0
        %1395 = vmatprep.subr.bf16.mxu0 0
        %1396 = vmatpush2.bf16.msra.mxu0 0
        %1397 = vmatprep.mubr.bf16.mxu0 0
        %1398 = vmatmul.mubr.bf16.gmra.mxu0 %v1111
        %v1399 = vpop.f32.mrf.mxu0
        %v1400 = vadd.f32 %v1267, %v1399
        %v1401 = vpop.f32.mrf.mxu0
        %v1402 = vadd.f32 %v1269, %v1401
        %v1403 = vpop.f32.mrf.mxu0
        %v1404 = vadd.f32 %v1271, %v1403
        %v1405 = vpop.f32.mrf.mxu0
        %v1406 = vadd.f32 %v1273, %v1405
        %1407 = vmatprep.mubr.bf16.mxu0 0
        %1408 = vmatmul.mubr.bf16.gmra.mxu0 %v1112
        %v1409 = vpop.f32.mrf.mxu0
        %v1410 = vadd.f32 %v1277, %v1409
        %v1411 = vpop.f32.mrf.mxu0
        %v1412 = vadd.f32 %v1279, %v1411
        %v1413 = vpop.f32.mrf.mxu0
        %v1414 = vadd.f32 %v1281, %v1413
        %v1415 = vpop.f32.mrf.mxu0
        %v1416 = vadd.f32 %v1283, %v1415
        %1417 = vdwg.mxu0
        %v1418 = vld [vmem:[#allocation3 + $0x2] sm:$0xff]
        %v1419 = vld [vmem:[#allocation3 + $0xa] sm:$0xff]
        %v1420 = vld [vmem:[#allocation3 + $0x12] sm:$0xff]
        %v1421 = vld [vmem:[#allocation3 + $0x1a] sm:$0xff]
        %v1422 = vpack.c.bf16 %v1419, %v1418
        %v1423 = vpack.c.bf16 %v1421, %v1420
        %s1424 = scalar_lea.vmem [#allocation10], 256
        %v1425 = vld [vmem:[%s1424] sm:$0xff]
        %v1426 = vld [vmem:[%s1424 + $0x8] sm:$0xff]
        %v1427 = vld [vmem:[%s1424 + $0x10] sm:$0xff]
        %v1428 = vld [vmem:[%s1424 + $0x18] sm:$0xff]
        %v1429 = vld [vmem:[%s1424 + $0x20] sm:$0xff]
        %v1430 = vld [vmem:[%s1424 + $0x28] sm:$0xff]
        %v1431 = vld [vmem:[%s1424 + $0x30] sm:$0xff]
        %v1432 = vld [vmem:[%s1424 + $0x38] sm:$0xff]
        %v1433 = vld [vmem:[%s1424 + $0x40] sm:$0xff]
        %v1434 = vld [vmem:[%s1424 + $0x48] sm:$0xff]
        %v1435 = vld [vmem:[%s1424 + $0x50] sm:$0xff]
        %v1436 = vld [vmem:[%s1424 + $0x58] sm:$0xff]
        %v1437 = vld [vmem:[%s1424 + $0x60] sm:$0xff]
        %v1438 = vld [vmem:[%s1424 + $0x68] sm:$0xff]
        %v1439 = vld [vmem:[%s1424 + $0x70] sm:$0xff]
        %v1440 = vld [vmem:[%s1424 + $0x78] sm:$0xff]
        %v1457 = vunpack.c.l.b16 %v1425
        %v1458 = vunpack.c.h.b16 %v1425
        %v1459 = vunpack.c.l.b16 %v1426
        %v1460 = vunpack.c.h.b16 %v1426
        %v1461 = vunpack.c.l.b16 %v1427
        %v1462 = vunpack.c.h.b16 %v1427
        %v1463 = vunpack.c.l.b16 %v1428
        %v1464 = vunpack.c.h.b16 %v1428
        %v1465 = vunpack.c.l.b16 %v1429
        %v1466 = vunpack.c.h.b16 %v1429
        %v1467 = vunpack.c.l.b16 %v1430
        %v1468 = vunpack.c.h.b16 %v1430
        %v1469 = vunpack.c.l.b16 %v1431
        %v1470 = vunpack.c.h.b16 %v1431
        %v1471 = vunpack.c.l.b16 %v1432
        %v1472 = vunpack.c.h.b16 %v1432
        %v1473 = vunpack.c.l.b16 %v1433
        %v1474 = vunpack.c.h.b16 %v1433
        %v1475 = vunpack.c.l.b16 %v1434
        %v1476 = vunpack.c.h.b16 %v1434
        %v1477 = vunpack.c.l.b16 %v1435
        %v1478 = vunpack.c.h.b16 %v1435
        %v1479 = vunpack.c.l.b16 %v1436
        %v1480 = vunpack.c.h.b16 %v1436
        %v1481 = vunpack.c.l.b16 %v1437
        %v1482 = vunpack.c.h.b16 %v1437
        %v1483 = vunpack.c.l.b16 %v1438
        %v1484 = vunpack.c.h.b16 %v1438
        %v1485 = vunpack.c.l.b16 %v1439
        %v1486 = vunpack.c.h.b16 %v1439
        %v1487 = vunpack.c.l.b16 %v1440
        %v1488 = vunpack.c.h.b16 %v1440
        %v1489 = vpack.c.b16 %v1459, %v1457
        %v1490 = vpack.c.b16 %v1460, %v1458
        %v1491 = vpack.c.b16 %v1463, %v1461
        %v1492 = vpack.c.b16 %v1464, %v1462
        %v1493 = vpack.c.b16 %v1467, %v1465
        %v1494 = vpack.c.b16 %v1468, %v1466
        %v1495 = vpack.c.b16 %v1471, %v1469
        %v1496 = vpack.c.b16 %v1472, %v1470
        %v1497 = vpack.c.b16 %v1475, %v1473
        %v1498 = vpack.c.b16 %v1476, %v1474
        %v1499 = vpack.c.b16 %v1479, %v1477
        %v1500 = vpack.c.b16 %v1480, %v1478
        %v1501 = vpack.c.b16 %v1483, %v1481
        %v1502 = vpack.c.b16 %v1484, %v1482
        %v1503 = vpack.c.b16 %v1487, %v1485
        %v1504 = vpack.c.b16 %v1488, %v1486
        %1521 = vmatprep.subr.bf16.mxu0 %v1504
        %1522 = vmatpush1.bf16.msra.mxu0 %v1503
        %1523 = vmatprep.subr.bf16.mxu0 %v1502
        %1524 = vmatpush1.bf16.msra.mxu0 %v1501
        %1525 = vmatprep.subr.bf16.mxu0 %v1500
        %1526 = vmatpush1.bf16.msra.mxu0 %v1499
        %1527 = vmatprep.subr.bf16.mxu0 %v1498
        %1528 = vmatpush1.bf16.msra.mxu0 %v1497
        %1529 = vmatprep.subr.bf16.mxu0 %v1496
        %1530 = vmatpush1.bf16.msra.mxu0 %v1495
        %1531 = vmatprep.subr.bf16.mxu0 %v1494
        %1532 = vmatpush1.bf16.msra.mxu0 %v1493
        %1533 = vmatprep.subr.bf16.mxu0 %v1492
        %1534 = vmatpush1.bf16.msra.mxu0 %v1491
        %1535 = vmatprep.subr.bf16.mxu0 %v1490
        %1536 = vmatpush1.bf16.msra.mxu0 %v1489
        %1537 = vmatprep.subr.bf16.mxu0 0
        %1538 = vmatpush2.bf16.msra.mxu0 0
        %1539 = vmatprep.subr.bf16.mxu0 0
        %1540 = vmatpush2.bf16.msra.mxu0 0
        %1541 = vmatprep.subr.bf16.mxu0 0
        %1542 = vmatpush2.bf16.msra.mxu0 0
        %1543 = vmatprep.subr.bf16.mxu0 0
        %1544 = vmatpush2.bf16.msra.mxu0 0
        %1545 = vmatprep.subr.bf16.mxu0 0
        %1546 = vmatpush2.bf16.msra.mxu0 0
        %1547 = vmatprep.subr.bf16.mxu0 0
        %1548 = vmatpush2.bf16.msra.mxu0 0
        %1549 = vmatprep.subr.bf16.mxu0 0
        %1550 = vmatpush2.bf16.msra.mxu0 0
        %1551 = vmatprep.subr.bf16.mxu0 0
        %1552 = vmatpush2.bf16.msra.mxu0 0
        %1553 = vmatprep.mubr.bf16.mxu0 0
        %1554 = vmatmul.mubr.bf16.gmra.mxu0 %v1422
        %v1555 = vpop.f32.mrf.mxu0
        %v1556 = vadd.f32 0.0, %v1555
        %v1557 = vpop.f32.mrf.mxu0
        %v1558 = vadd.f32 0.0, %v1557
        %v1559 = vpop.f32.mrf.mxu0
        %v1560 = vadd.f32 0.0, %v1559
        %v1561 = vpop.f32.mrf.mxu0
        %v1562 = vadd.f32 0.0, %v1561
        %1563 = vmatprep.mubr.bf16.mxu0 0
        %1564 = vmatmul.mubr.bf16.gmra.mxu0 %v1423
        %v1565 = vpop.f32.mrf.mxu0
        %v1566 = vadd.f32 0.0, %v1565
        %v1567 = vpop.f32.mrf.mxu0
        %v1568 = vadd.f32 0.0, %v1567
        %v1569 = vpop.f32.mrf.mxu0
        %v1570 = vadd.f32 0.0, %v1569
        %v1571 = vpop.f32.mrf.mxu0
        %v1572 = vadd.f32 0.0, %v1571
        %1573 = vdwg.mxu0
        %v1574 = vadd.f32 %v1400, %v1556
        %v1575 = vadd.f32 %v1402, %v1558
        %v1576 = vadd.f32 %v1404, %v1560
        %v1577 = vadd.f32 %v1406, %v1562
        %v1578 = vadd.f32 %v1410, %v1566
        %v1579 = vadd.f32 %v1412, %v1568
        %v1580 = vadd.f32 %v1414, %v1570
        %v1581 = vadd.f32 %v1416, %v1572
        %v1582 = vld [vmem:[%s9] sm:$0x3]
        %v1584 = vlaneseq
        %v1585 = vshrl.u32 %v1584, 7
        %v1586 = vsub.s32 0, %v1585
        %v1587 = vrot.slane %v1582, %v1586
        %v1588 = vlaneseq
        %v1589 = vshrl.u32 %v1588, 7
        %v1590 = vsub.s32 1, %v1589
        %v1591 = vrot.slane %v1582, %v1590
        %v1594 = vadd.f32 %v1574, %v1587
        %v1595 = vadd.f32 %v1575, %v1591
        %v1596 = vadd.f32 %v1576, %v1587
        %v1597 = vadd.f32 %v1577, %v1591
        %v1598 = vadd.f32 %v1578, %v1587
        %v1599 = vadd.f32 %v1579, %v1591
        %v1600 = vadd.f32 %v1580, %v1587
        %v1601 = vadd.f32 %v1581, %v1591
        %v1602 = vxor.u32 %v1594, 2147483648
        %v1603 = vxor.u32 %v1595, 2147483648
        %v1604 = vxor.u32 %v1596, 2147483648
        %v1605 = vxor.u32 %v1597, 2147483648
        %v1606 = vxor.u32 %v1598, 2147483648
        %v1607 = vxor.u32 %v1599, 2147483648
        %v1608 = vxor.u32 %v1600, 2147483648
        %v1609 = vxor.u32 %v1601, 2147483648
        %v1610 = vmul.f32 %v1602, 1.442695
        %v1611 = vpow.pop %v1610
        %v1612 = vmul.f32 %v1603, 1.442695
        %v1613 = vpow.pop %v1612
        %v1614 = vmul.f32 %v1604, 1.442695
        %v1615 = vpow.pop %v1614
        %v1616 = vmul.f32 %v1605, 1.442695
        %v1617 = vpow.pop %v1616
        %v1618 = vmul.f32 %v1606, 1.442695
        %v1619 = vpow.pop %v1618
        %v1620 = vmul.f32 %v1607, 1.442695
        %v1621 = vpow.pop %v1620
        %v1622 = vmul.f32 %v1608, 1.442695
        %v1623 = vpow.pop %v1622
        %v1624 = vmul.f32 %v1609, 1.442695
        %v1625 = vpow.pop %v1624
        %v1626 = vadd.f32 %v1611, 1.0
        %v1627 = vadd.f32 %v1613, 1.0
        %v1628 = vadd.f32 %v1615, 1.0
        %v1629 = vadd.f32 %v1617, 1.0
        %v1630 = vadd.f32 %v1619, 1.0
        %v1631 = vadd.f32 %v1621, 1.0
        %v1632 = vadd.f32 %v1623, 1.0
        %v1633 = vadd.f32 %v1625, 1.0
        %v1634 = vrcp.pop %v1626
        %v1635 = vmul.f32 1.0, %v1634
        %v1636 = vrcp.pop %v1627
        %v1637 = vmul.f32 1.0, %v1636
        %v1638 = vrcp.pop %v1628
        %v1639 = vmul.f32 1.0, %v1638
        %v1640 = vrcp.pop %v1629
        %v1641 = vmul.f32 1.0, %v1640
        %v1642 = vrcp.pop %v1630
        %v1643 = vmul.f32 1.0, %v1642
        %v1644 = vrcp.pop %v1631
        %v1645 = vmul.f32 1.0, %v1644
        %v1646 = vrcp.pop %v1632
        %v1647 = vmul.f32 1.0, %v1646
        %v1648 = vrcp.pop %v1633
        %v1649 = vmul.f32 1.0, %v1648
        %v1650 = vmul.f32 %v1594, %v1635
        %v1651 = vmul.f32 %v1595, %v1637
        %v1652 = vmul.f32 %v1596, %v1639
        %v1653 = vmul.f32 %v1597, %v1641
        %v1654 = vmul.f32 %v1598, %v1643
        %v1655 = vmul.f32 %v1599, %v1645
        %v1656 = vmul.f32 %v1600, %v1647
        %v1657 = vmul.f32 %v1601, %v1649
        %v1658 = vld [vmem:[%s10] sm:$0x3]
        %v1660 = vlaneseq
        %v1661 = vshrl.u32 %v1660, 7
        %v1662 = vsub.s32 0, %v1661
        %v1663 = vrot.slane %v1658, %v1662
        %v1664 = vlaneseq
        %v1665 = vshrl.u32 %v1664, 7
        %v1666 = vsub.s32 1, %v1665
        %v1667 = vrot.slane %v1658, %v1666
        %v1670 = vmul.f32 %v1650, %v1663
        %v1671 = vmul.f32 %v1651, %v1667
        %v1672 = vmul.f32 %v1652, %v1663
        %v1673 = vmul.f32 %v1653, %v1667
        %v1674 = vmul.f32 %v1654, %v1663
        %v1675 = vmul.f32 %v1655, %v1667
        %v1676 = vmul.f32 %v1656, %v1663
        %v1677 = vmul.f32 %v1657, %v1667
        %v1678 = vld [vmem:[%s11] sm:$0x3]
        %v1680 = vlaneseq
        %v1681 = vshrl.u32 %v1680, 7
        %v1682 = vsub.s32 0, %v1681
        %v1683 = vrot.slane %v1678, %v1682
        %v1684 = vlaneseq
        %v1685 = vshrl.u32 %v1684, 7
        %v1686 = vsub.s32 1, %v1685
        %v1687 = vrot.slane %v1678, %v1686
        %v1690 = vadd.f32 %v1670, %v1683
        %v1691 = vadd.f32 %v1671, %v1687
        %v1692 = vadd.f32 %v1672, %v1683
        %v1693 = vadd.f32 %v1673, %v1687
        %v1694 = vadd.f32 %v1674, %v1683
        %v1695 = vadd.f32 %v1675, %v1687
        %v1696 = vadd.f32 %v1676, %v1683
        %v1697 = vadd.f32 %v1677, %v1687
        %1698 = vst [vmem:[%s484] sm:$0xff] %v1690
        %1699 = vst [vmem:[%s484 + $0x8] sm:$0xff] %v1691
        %1700 = vst [vmem:[%s484 + $0x10] sm:$0xff] %v1692
        %1701 = vst [vmem:[%s484 + $0x18] sm:$0xff] %v1693
        %1702 = vst [vmem:[%s484 + $0x20] sm:$0xff] %v1694
        %1703 = vst [vmem:[%s484 + $0x28] sm:$0xff] %v1695
        %1704 = vst [vmem:[%s484 + $0x30] sm:$0xff] %v1696
        %1705 = vst [vmem:[%s484 + $0x38] sm:$0xff] %v1697
        %s1706 = sand.u32 %s301, 1
        %s1707 = scalar_lea.sflag [#allocation6], %s1706
        %s1708 = sand.u32 %s301, 1
        %s1709 = smul.addr %s1708, 64
        %s1710 = scalar_lea.vmem [#allocation12], %s1709
        // Predicated region
        $region85: #{tpu_custom_call.1} parent=67 // pred_check
          %p1711 = pneg %p311
        $region86: #{tpu_custom_call.1} parent=67 // pred_check_branch
          %1713 = sbr.rel (%p1711) target = $region88
        $region87: #{tpu_custom_call.1} parent=67 // pred_region
          %s1715 = ssub.s32 1024, 1024
          %1716 = vsyncadd %s1707, %s1715
          %s1717 = smul.addr %s31, 8
          %s1718 = smul.addr %s1717, 128
          %s1719 = scalar_lea.hbm %s12, %s1718
          %s1720 = sshll.u32 %s1710, 4
          %s1721 = int_to_ptr.vmem [resolvable:$true] %s1720
          %1726 = dma.vmem_to_hbm [thread:$0]  %s1721, 1024, %s1719, %s1707, 256, 256, 16
        $region88: #{tpu_custom_call.1} parent=67 // pred_fallthru
          _
      $region68: #{tpu_custom_call.1} parent=5 // pred_fallthru
        _
      %p1727 = scmp.le.s32.totalorder 2, %s26
      // Predicated region
      $region89: #{tpu_custom_call.1} parent=5 // pred_check
        %p1728 = pneg %p1727
      $region90: #{tpu_custom_call.1} parent=5 // pred_check_branch
        %1730 = sbr.rel (%p1728) target = $region92
      $region91: #{tpu_custom_call.1} parent=5 // pred_region
        %s1731 = ssub.s32 %s26, 2
        // Predicated region
        $region93: #{tpu_custom_call.1} parent=91 // pred_check
          %p1732 = pneg %p317
        $region94: #{tpu_custom_call.1} parent=91 // pred_check_branch
          %1734 = sbr.rel (%p1732) target = $region96
        $region95: #{tpu_custom_call.1} parent=91 // pred_region
          %s1735 = sand.u32 %s302, 1
          %s1736 = scalar_lea.sflag [#allocation6], %s1735
          %s1737 = sand.u32 %s302, 1
          %s1738 = smul.addr %s1737, 64
          %s1739 = scalar_lea.vmem [#allocation12], %s1738
          %1740 = dma.done %s1736, 1024
        $region96: #{tpu_custom_call.1} parent=91 // pred_fallthru
          _
      $region92: #{tpu_custom_call.1} parent=5 // pred_fallthru
        _
    $region6: #{tpu_custom_call.1} parent=1 // loop_footer
      %s30 = sadd.s32 1, %s26
    $region7: #{tpu_custom_call.1} parent=1 // loop_footer_branch
      %25 = sbr.rel target = $region3
    $region8: #{tpu_custom_call.1} parent=1 // loop_exit
      _
    %1741 = vsyncpa [#allocation5], 1
    %s1742 = scalar_lea.sflag [#allocation5], 1
    %1743 = vsyncpa %s1742, 1
    %1744 = vsyncpa [#allocation8], 1
    %1745 = vsyncpa [#allocation11], 1
    %1746 = vsyncpa [#allocation6], 1
    %s1747 = scalar_lea.sflag [#allocation6], 1
    %1748 = vsyncpa %s1747, 1

</llo_original>
